<compile_context>
chip_gen: v5e
topology: v5e:2x2
jax: 0.10.0
libtpu: 0.0.40
codegen_flags: <defaults>
</compile_context>

<pallas_src>
from functools import partial

import jax
import jax.numpy as jnp
from jax import lax
from jax.experimental import pallas as pl
from jax.experimental.pallas import tpu as pltpu


def _group_norm(h, pinv_ref, gamma_ref, beta_ref, eps):
    """Two-pass GroupNorm in channel-major layout.

    h: (C, HW) f32.  pinv_ref: (C, C) same-group indicator pre-scaled by 1/(HW * C/g).
    gamma/beta: (C, 1).  Per-channel sums are lane reductions; group aggregation is a tiny matvec.
    """
    s = jnp.sum(h, axis=1, keepdims=True)                                    # (C, 1)
    mean_c = jnp.dot(pinv_ref[...], s, preferred_element_type=jnp.float32)   # group mean / channel
    centered = h - mean_c
    q = jnp.sum(centered * centered, axis=1, keepdims=True)                  # (C, 1)
    var_c = jnp.dot(pinv_ref[...], q, preferred_element_type=jnp.float32)    # group var (>= 0)
    return centered * (lax.rsqrt(var_c + eps) * gamma_ref[...]) + beta_ref[...]


def _ws_conv3x3(h, w_ref, b_ref, masks, H, W):
    """3x3 same-padding conv as 9 per-tap MXU matmuls with f32 accumulation.

    h: (C, HW) f32 activations.
    w_ref: (9, c_out, C) bf16 standardized weights, tap-major (tap = ky*3 + kx).
    masks: (9, HW) bf16 0/1 border-valid masks (precomputed on the host).
    Returns (c_out, HW) f32.
    """
    C, HW = h.shape
    c_out = w_ref.shape[1]
    bf16 = jnp.bfloat16

    h_bf = h.astype(bf16)
    zpad = jnp.zeros((C, W + 1), bf16)
    hp = jnp.concatenate([zpad, h_bf, zpad], axis=1)          # (C, HW + 2W + 2), bf16

    acc = jnp.zeros((c_out, HW), jnp.float32)
    for tap in range(9):
        dy, dx = divmod(tap, 3)
        s = (dy - 1) * W + (dx - 1)                           # flat source offset
        if s == 0:
            sh = h_bf                                         # center tap: no shift, no mask
        else:
            sh = hp[:, (W + 1) + s:(W + 1) + s + HW]          # sh[:, i] == h[:, i + s] (0-filled)
        if dx != 1:                                           # row-crossing only for dx != 1;
            sh = sh * masks[tap:tap + 1, :]                   # y-overflow handled by zero pad
        acc = acc + jnp.dot(w_ref[tap], sh, preferred_element_type=jnp.float32)
    return acc + b_ref[...]


def _resnet_block_kernel(*refs, H, W, c_in, c_out, use_res_conv):
    if use_res_conv:
        (x_ref, scale_ref, shift_ref, masks_ref,
         gamma1_ref, beta1_ref, pinv1_ref, w1_ref, b1_ref,
         gamma2_ref, beta2_ref, pinv2_ref, w2_ref, b2_ref,
         w_res_t_ref, b_res_ref, out_ref) = refs
    else:
        (x_ref, scale_ref, shift_ref, masks_ref,
         gamma1_ref, beta1_ref, pinv1_ref, w1_ref, b1_ref,
         gamma2_ref, beta2_ref, pinv2_ref, w2_ref, b2_ref,
         out_ref) = refs
        w_res_t_ref = b_res_ref = None

    eps = 1e-5
    f32 = jnp.float32

    x_bf = x_ref[0]                                           # (c_in, HW) bf16, lane-dense
    masks = masks_ref[...]                                    # (9, HW) bf16, VMEM-resident

    # ---- residual early only when it is the smaller live tensor (c_out < c_in) ----
    res = None
    if use_res_conv and c_out < c_in:
        res = jnp.dot(w_res_t_ref[...], x_bf, preferred_element_type=f32) + b_res_ref[...]

    # ---- input_layer: GroupNorm -> SiLU -> WSConv3x3 -> GroupNorm ----
    h = _group_norm(x_bf.astype(f32), pinv1_ref, gamma1_ref, beta1_ref, eps)
    h = h * jax.nn.sigmoid(h)
    h = _ws_conv3x3(h, w1_ref, b1_ref, masks, H, W)           # (c_out, HW) f32
    h = _group_norm(h, pinv2_ref, gamma2_ref, beta2_ref, eps)

    # ---- time-embedding FiLM (scale/shift precomputed in the wrapper) ----
    h = h * (scale_ref[0] + 1.0) + shift_ref[0]

    # ---- output_layer: SiLU -> Dropout(identity, inference) -> WSConv3x3 ----
    h = h * jax.nn.sigmoid(h)
    h = _ws_conv3x3(h, w2_ref, b2_ref, masks, H, W)           # (c_out, HW) f32

    # ---- residual (late when c_out >= c_in: only bf16 x stayed live) ----
    if res is None:
        if use_res_conv:
            res = jnp.dot(w_res_t_ref[...], x_bf, preferred_element_type=f32) + b_res_ref[...]
        else:
            res = x_bf.astype(f32)                            # nn.Identity when dim == dim_out

    out_ref[0] = (h + res).astype(out_ref.dtype)


def resnet_block_forward(x_nchw, time_emb, params, *, groups):
    B, c_in, H, W = x_nchw.shape
    HW = H * W
    c_out = params["b1"].shape[-1]
    f32 = jnp.float32
    bf16 = jnp.bfloat16
    eps = 1e-5

    # ----- host/XLA side: done once per call, NOT once per grid step -----
    # Weight standardization + per-tap (9, c_out, c_in_tap) layout + bf16 cast.
    def ws_taps(w_hwio):
        ci, co = w_hwio.shape[2], w_hwio.shape[3]
        w = jnp.transpose(w_hwio, (3, 0, 1, 2)).reshape(co, 9 * ci).astype(f32)
        mean = jnp.mean(w, axis=1, keepdims=True)
        var = jnp.var(w, axis=1, keepdims=True)               # ddof=0
        wn = (w - mean) * lax.rsqrt(var + eps)
        return jnp.transpose(wn.reshape(co, 9, ci), (1, 0, 2)).astype(bf16)   # (9, co, ci)

    w1n = ws_taps(params["w1_hwio"])                          # (9, c_out, c_in)  bf16
    w2n = ws_taps(params["w2_hwio"])                          # (9, c_out, c_out) bf16

    # Time-embedding MLP hoisted out of the kernel: one full-width batched matmul per call.
    emb = jax.nn.silu(time_emb.astype(f32)) @ params["w_emb"].astype(f32) + params["b_emb"].astype(f32)
    scale = emb[:, :c_out].reshape(B, c_out, 1)
    shift = emb[:, c_out:].reshape(B, c_out, 1)

    # Border-valid masks (9, HW), computed once on the host (kernel sees a VMEM-resident constant).
    idx = jnp.arange(HW, dtype=jnp.int32)
    ys, xs = idx // W, idx % W
    mask_rows = []
    for dy in range(3):
        for dx in range(3):
            sy, sx = ys + dy - 1, xs + dx - 1
            mask_rows.append((sy >= 0) & (sy < H) & (sx >= 0) & (sx < W))
    masks = jnp.stack(mask_rows, axis=0).astype(bf16)         # (9, HW)

    # Group-mean projectors with 1/n folded in (contiguous channel grouping, like nn.GroupNorm).
    gi = jnp.arange(c_in) // (c_in // groups)
    pinv1 = (gi[:, None] == gi[None, :]).astype(f32) / float(HW * (c_in // groups))
    go = jnp.arange(c_out) // (c_out // groups)
    pinv2 = (go[:, None] == go[None, :]).astype(f32) / float(HW * (c_out // groups))

    use_res_conv = (c_in != c_out)

    args = [
        x_nchw.reshape(B, c_in, HW).astype(bf16),             # NCHW -> (B, C, HW), bf16 over HBM
        scale.astype(f32),
        shift.astype(f32),
        masks,
        params["gamma1"].reshape(-1, 1).astype(f32),
        params["beta1"].reshape(-1, 1).astype(f32),
        pinv1,
        w1n, params["b1"].reshape(-1, 1).astype(f32),
        params["gamma2"].reshape(-1, 1).astype(f32),
        params["beta2"].reshape(-1, 1).astype(f32),
        pinv2,
        w2n, params["b2"].reshape(-1, 1).astype(f32),
    ]
    if use_res_conv:
        args += [params["w_res"].T.astype(bf16),              # (c_out, c_in)
                 params["b_res"].reshape(-1, 1).astype(f32)]  # (c_out, 1)

    # Parameters use constant index_maps -> blocks stay VMEM-resident across the batch grid.
    def full_spec(a):
        nd = a.ndim
        return pl.BlockSpec(a.shape, lambda b, _nd=nd: (0,) * _nd)

    in_specs = [
        pl.BlockSpec((1, c_in, HW), lambda b: (b, 0, 0)),     # x: lane-dense (HW) blocks
        pl.BlockSpec((1, c_out, 1), lambda b: (b, 0, 0)),     # FiLM scale column
        pl.BlockSpec((1, c_out, 1), lambda b: (b, 0, 0)),     # FiLM shift column
    ] + [full_spec(a) for a in args[3:]]

    kernel = partial(_resnet_block_kernel, H=H, W=W, c_in=c_in, c_out=c_out,
                     use_res_conv=use_res_conv)

    out = pl.pallas_call(
        kernel,
        out_shape=jax.ShapeDtypeStruct((B, c_out, HW), f32),
        grid_spec=pltpu.PrefetchScalarGridSpec(
            num_scalar_prefetch=0,
            grid=(B,),
            in_specs=in_specs,
            out_specs=pl.BlockSpec((1, c_out, HW), lambda b: (b, 0, 0)),  # lane-dense output
        ),
        compiler_params=pltpu.CompilerParams(dimension_semantics=("parallel",)),
    )(*args)

    return out.reshape(B, c_out, H, W)                        # free reshape back to NCHW


# ------------------------- deterministic parameter init -------------------------
def init_params(key, c_in, c_out, time_emb_dim):
    ks = jax.random.split(key, 12)
    rnd = lambda k, shape, s=0.1: jax.random.normal(k, shape, jnp.float32) * s
    return dict(
        w_emb=rnd(ks[0], (time_emb_dim, 2 * c_out)),
        b_emb=rnd(ks[1], (2 * c_out,)),
        gamma1=1.0 + rnd(ks[2], (c_in,)),
        beta1=rnd(ks[3], (c_in,)),
        w1_hwio=rnd(ks[4], (3, 3, c_in, c_out)),
        b1=rnd(ks[5], (c_out,)),
        gamma2=1.0 + rnd(ks[6], (c_out,)),
        beta2=rnd(ks[7], (c_out,)),
        w2_hwio=rnd(ks[8], (3, 3, c_out, c_out)),
        b2=rnd(ks[9], (c_out,)),
        w_res=rnd(ks[10], (c_in, c_out), 0.2),
        b_res=rnd(ks[11], (c_out,)),
    )


# ------------------------- pure-JAX f32 reference for validation -------------------------
def _group_norm_ref(x, groups, gamma, beta, eps=1e-5):
    B, H, W, C = x.shape
    xg = x.reshape(B, H, W, groups, C // groups)
    mean = xg.mean(axis=(1, 2, 4), keepdims=True)
    var = xg.var(axis=(1, 2, 4), keepdims=True)
    xn = ((xg - mean) * lax.rsqrt(var + eps)).reshape(B, H, W, C)
    return xn * gamma + beta


def _ws_conv3x3_ref(x, w_hwio, b, eps=1e-5):
    mean = w_hwio.mean(axis=(0, 1, 2), keepdims=True)
    var = w_hwio.var(axis=(0, 1, 2), keepdims=True)
    wn = (w_hwio - mean) * lax.rsqrt(var + eps)
    y = lax.conv_general_dilated(x, wn, (1, 1), ((1, 1), (1, 1)),
                                 dimension_numbers=("NHWC", "HWIO", "NHWC"))
    return y + b


def ref_forward(x_nchw, t, p, groups):
    x = jnp.transpose(x_nchw, (0, 2, 3, 1))
    c_out = p["b1"].shape[0]
    te = jax.nn.silu(t) @ p["w_emb"] + p["b_emb"]
    scale, shift = te[:, :c_out], te[:, c_out:]
    h = _group_norm_ref(x, groups, p["gamma1"], p["beta1"])
    h = jax.nn.silu(h)
    h = _ws_conv3x3_ref(h, p["w1_hwio"], p["b1"])
    h = _group_norm_ref(h, groups, p["gamma2"], p["beta2"])
    h = h * (scale[:, None, None, :] + 1.0) + shift[:, None, None, :]
    h = jax.nn.silu(h)
    h = _ws_conv3x3_ref(h, p["w2_hwio"], p["b2"])
    if x.shape[-1] != c_out:
        res = jnp.einsum("bhwc,cd->bhwd", x, p["w_res"]) + p["b_res"]
    else:
        res = x
    return jnp.transpose(h + res, (0, 3, 1, 2))


if __name__ == "__main__":
    B, c_in, c_out, H, W = 2, 8, 16, 16, 16
    groups, time_emb_dim = 8, 32

    key = jax.random.PRNGKey(0)
    kx, kt, kp = jax.random.split(key, 3)
    x = jax.random.normal(kx, (B, c_in, H, W), jnp.float32)       # PyTorch NCHW input
    t_emb = jax.random.normal(kt, (B, time_emb_dim), jnp.float32)
    params = init_params(kp, c_in, c_out, time_emb_dim)

    out = resnet_block_forward(x, t_emb, params, groups=groups)
    out = jax.block_until_ready(out)

    ref = ref_forward(x, t_emb, params, groups)
    assert out.shape == (B, c_out, H, W), out.shape
    err = float(jnp.max(jnp.abs(out - ref)))
    ref_scale = float(jnp.max(jnp.abs(ref)))
    # bf16 activations/operands on the MXU (f32 accumulation) vs f32 reference.
    assert err <= 2e-2 * max(ref_scale, 1.0), f"max abs error {err} (ref scale {ref_scale})"
    print("KERNEL_OK")
</pallas_src>

<mosaic_0001>
module attributes {stable_mosaic.version = 11 : i64} {
  func.func @_resnet_block_kernel(%arg0: i32, %arg1: memref<1x8x256xbf16, #tpu.memory_space<vmem>>, %arg2: memref<1x16x1xf32, #tpu.memory_space<vmem>>, %arg3: memref<1x16x1xf32, #tpu.memory_space<vmem>>, %arg4: memref<9x256xbf16, #tpu.memory_space<vmem>>, %arg5: memref<8x1xf32, #tpu.memory_space<vmem>>, %arg6: memref<8x1xf32, #tpu.memory_space<vmem>>, %arg7: memref<8x8xf32, #tpu.memory_space<vmem>>, %arg8: memref<9x16x8xbf16, #tpu.memory_space<vmem>>, %arg9: memref<16x1xf32, #tpu.memory_space<vmem>>, %arg10: memref<16x1xf32, #tpu.memory_space<vmem>>, %arg11: memref<16x1xf32, #tpu.memory_space<vmem>>, %arg12: memref<16x16xf32, #tpu.memory_space<vmem>>, %arg13: memref<9x16x16xbf16, #tpu.memory_space<vmem>>, %arg14: memref<16x1xf32, #tpu.memory_space<vmem>>, %arg15: memref<16x8xbf16, #tpu.memory_space<vmem>>, %arg16: memref<16x1xf32, #tpu.memory_space<vmem>>, %arg17: memref<1x16x256xf32, #tpu.memory_space<vmem>>) attributes {dimension_semantics = [#tpu.dimension_semantics<parallel>], iteration_bounds = array<i64: 2>, scalar_prefetch = 0 : i64, scratch_operands = 0 : i64, tpu.core_type = #tpu.core_type<tc>, window_params = [{transform_indices = @transform_0, window_bounds = array<i64: 1, 8, 256>}, {transform_indices = @transform_1, window_bounds = array<i64: 1, 16, 1>}, {transform_indices = @transform_2, window_bounds = array<i64: 1, 16, 1>}, {pipeline_mode = #tpu.pipeline_mode<synchronous>, transform_indices = @transform_3, window_bounds = array<i64: 9, 256>}, {pipeline_mode = #tpu.pipeline_mode<synchronous>, transform_indices = @transform_4, window_bounds = array<i64: 8, 1>}, {pipeline_mode = #tpu.pipeline_mode<synchronous>, transform_indices = @transform_5, window_bounds = array<i64: 8, 1>}, {pipeline_mode = #tpu.pipeline_mode<synchronous>, transform_indices = @transform_6, window_bounds = array<i64: 8, 8>}, {pipeline_mode = #tpu.pipeline_mode<synchronous>, transform_indices = @transform_7, window_bounds = array<i64: 9, 16, 8>}, {pipeline_mode = #tpu.pipeline_mode<synchronous>, transform_indices = @transform_8, window_bounds = array<i64: 16, 1>}, {pipeline_mode = #tpu.pipeline_mode<synchronous>, transform_indices = @transform_9, window_bounds = array<i64: 16, 1>}, {pipeline_mode = #tpu.pipeline_mode<synchronous>, transform_indices = @transform_10, window_bounds = array<i64: 16, 1>}, {pipeline_mode = #tpu.pipeline_mode<synchronous>, transform_indices = @transform_11, window_bounds = array<i64: 16, 16>}, {pipeline_mode = #tpu.pipeline_mode<synchronous>, transform_indices = @transform_12, window_bounds = array<i64: 9, 16, 16>}, {pipeline_mode = #tpu.pipeline_mode<synchronous>, transform_indices = @transform_13, window_bounds = array<i64: 16, 1>}, {pipeline_mode = #tpu.pipeline_mode<synchronous>, transform_indices = @transform_14, window_bounds = array<i64: 16, 8>}, {pipeline_mode = #tpu.pipeline_mode<synchronous>, transform_indices = @transform_15, window_bounds = array<i64: 16, 1>}, {transform_indices = @transform_16, window_bounds = array<i64: 1, 16, 256>}]} {
    %c0 = arith.constant 0 : index
    %c0_0 = arith.constant 0 : index
    %c0_1 = arith.constant 0 : index
    %0 = vector.load %arg1[%c0, %c0_0, %c0_1] : memref<1x8x256xbf16, #tpu.memory_space<vmem>>, vector<1x8x256xbf16>
    %1 = vector.shape_cast %0 : vector<1x8x256xbf16> to vector<8x256xbf16>
    %c0_2 = arith.constant 0 : index
    %c0_3 = arith.constant 0 : index
    %2 = vector.load %arg4[%c0_2, %c0_3] : memref<9x256xbf16, #tpu.memory_space<vmem>>, vector<9x256xbf16>
    %3 = arith.extf %1 : vector<8x256xbf16> to vector<8x256xf32>
    %cst = arith.constant dense<0.000000e+00> : vector<8xf32>
    %4 = vector.multi_reduction <add>, %3, %cst [1] : vector<8x256xf32> to vector<8xf32>
    %5 = vector.shape_cast %4 : vector<8xf32> to vector<8x1xf32>
    %c0_4 = arith.constant 0 : index
    %c0_5 = arith.constant 0 : index
    %6 = vector.load %arg7[%c0_4, %c0_5] : memref<8x8xf32, #tpu.memory_space<vmem>>, vector<8x8xf32>
    %cst_6 = arith.constant dense<0.000000e+00> : vector<8x1xf32>
    %7 = tpu.matmul %6, %5, %cst_6 {dimension_numbers = #tpu.dot_dimension_numbers<[1], [0], [0], [1], [0, 0, 1, 1], [], []>} : vector<8x8xf32>, vector<8x1xf32>, vector<8x1xf32> -> vector<8x1xf32>
    %8 = vector.broadcast %7 : vector<8x1xf32> to vector<8x256xf32>
    %9 = arith.subf %3, %8 : vector<8x256xf32>
    %10 = arith.mulf %9, %9 : vector<8x256xf32>
    %cst_7 = arith.constant dense<0.000000e+00> : vector<8xf32>
    %11 = vector.multi_reduction <add>, %10, %cst_7 [1] : vector<8x256xf32> to vector<8xf32>
    %12 = vector.shape_cast %11 : vector<8xf32> to vector<8x1xf32>
    %c0_8 = arith.constant 0 : index
    %c0_9 = arith.constant 0 : index
    %13 = vector.load %arg7[%c0_8, %c0_9] : memref<8x8xf32, #tpu.memory_space<vmem>>, vector<8x8xf32>
    %cst_10 = arith.constant dense<0.000000e+00> : vector<8x1xf32>
    %14 = tpu.matmul %13, %12, %cst_10 {dimension_numbers = #tpu.dot_dimension_numbers<[1], [0], [0], [1], [0, 0, 1, 1], [], []>} : vector<8x8xf32>, vector<8x1xf32>, vector<8x1xf32> -> vector<8x1xf32>
    %cst_11 = arith.constant 9.99999974E-6 : f32
    %15 = vector.broadcast %cst_11 : f32 to vector<8x1xf32>
    %16 = arith.addf %14, %15 : vector<8x1xf32>
    %17 = math.rsqrt %16 : vector<8x1xf32>
    %c0_12 = arith.constant 0 : index
    %c0_13 = arith.constant 0 : index
    %18 = vector.load %arg5[%c0_12, %c0_13] : memref<8x1xf32, #tpu.memory_space<vmem>>, vector<8x1xf32>
    %19 = arith.mulf %17, %18 : vector<8x1xf32>
    %20 = vector.broadcast %19 : vector<8x1xf32> to vector<8x256xf32>
    %21 = arith.mulf %9, %20 : vector<8x256xf32>
    %c0_14 = arith.constant 0 : index
    %c0_15 = arith.constant 0 : index
    %22 = vector.load %arg6[%c0_14, %c0_15] : memref<8x1xf32, #tpu.memory_space<vmem>>, vector<8x1xf32>
    %23 = vector.broadcast %22 : vector<8x1xf32> to vector<8x256xf32>
    %24 = arith.addf %21, %23 : vector<8x256xf32>
    %25 = arith.negf %24 : vector<8x256xf32>
    %26 = math.exp %25 : vector<8x256xf32>
    %cst_16 = arith.constant 1.000000e+00 : f32
    %27 = vector.broadcast %cst_16 : f32 to vector<8x256xf32>
    %28 = arith.addf %27, %26 : vector<8x256xf32>
    %29 = arith.divf %27, %28 : vector<8x256xf32>
    %30 = arith.mulf %24, %29 : vector<8x256xf32>
    %31 = arith.truncf %30 : vector<8x256xf32> to vector<8x256xbf16>
    %cst_17 = arith.constant 0.000000e+00 : bf16
    %32 = vector.broadcast %cst_17 : bf16 to vector<8x17xbf16>
    %33 = tpu.concatenate %32, %31, %32 in 1 : vector<8x17xbf16>, vector<8x256xbf16>, vector<8x17xbf16> -> vector<8x290xbf16>
    %cst_18 = arith.constant 0.000000e+00 : f32
    %34 = vector.broadcast %cst_18 : f32 to vector<16x256xf32>
    %35 = vector.extract_strided_slice %33 {offsets = [0, 0], sizes = [8, 256], strides = [1, 1]} : vector<8x290xbf16> to vector<8x256xbf16>
    %36 = vector.extract_strided_slice %2 {offsets = [0, 0], sizes = [1, 256], strides = [1, 1]} : vector<9x256xbf16> to vector<1x256xbf16>
    %37 = vector.broadcast %36 : vector<1x256xbf16> to vector<8x256xbf16>
    %38 = arith.mulf %35, %37 : vector<8x256xbf16>
    %c0_19 = arith.constant 0 : index
    %c0_20 = arith.constant 0 : index
    %c0_21 = arith.constant 0 : index
    %39 = vector.load %arg8[%c0_19, %c0_20, %c0_21] : memref<9x16x8xbf16, #tpu.memory_space<vmem>>, vector<1x16x8xbf16>
    %40 = vector.shape_cast %39 : vector<1x16x8xbf16> to vector<16x8xbf16>
    %cst_22 = arith.constant dense<0.000000e+00> : vector<16x256xf32>
    %41 = tpu.matmul %40, %38, %cst_22 {dimension_numbers = #tpu.dot_dimension_numbers<[1], [0], [0], [1], [0, 0, 1, 1], [], []>} : vector<16x8xbf16>, vector<8x256xbf16>, vector<16x256xf32> -> vector<16x256xf32>
    %42 = arith.addf %34, %41 : vector<16x256xf32>
    %43 = vector.extract_strided_slice %33 {offsets = [0, 1], sizes = [8, 256], strides = [1, 1]} : vector<8x290xbf16> to vector<8x256xbf16>
    %c1 = arith.constant 1 : index
    %c0_23 = arith.constant 0 : index
    %c0_24 = arith.constant 0 : index
    %44 = vector.load %arg8[%c1, %c0_23, %c0_24] : memref<9x16x8xbf16, #tpu.memory_space<vmem>>, vector<1x16x8xbf16>
    %45 = vector.shape_cast %44 : vector<1x16x8xbf16> to vector<16x8xbf16>
    %cst_25 = arith.constant dense<0.000000e+00> : vector<16x256xf32>
    %46 = tpu.matmul %45, %43, %cst_25 {dimension_numbers = #tpu.dot_dimension_numbers<[1], [0], [0], [1], [0, 0, 1, 1], [], []>} : vector<16x8xbf16>, vector<8x256xbf16>, vector<16x256xf32> -> vector<16x256xf32>
    %47 = arith.addf %42, %46 : vector<16x256xf32>
    %48 = vector.extract_strided_slice %33 {offsets = [0, 2], sizes = [8, 256], strides = [1, 1]} : vector<8x290xbf16> to vector<8x256xbf16>
    %49 = vector.extract_strided_slice %2 {offsets = [2, 0], sizes = [1, 256], strides = [1, 1]} : vector<9x256xbf16> to vector<1x256xbf16>
    %50 = vector.broadcast %49 : vector<1x256xbf16> to vector<8x256xbf16>
    %51 = arith.mulf %48, %50 : vector<8x256xbf16>
    %c2 = arith.constant 2 : index
    %c0_26 = arith.constant 0 : index
    %c0_27 = arith.constant 0 : index
    %52 = vector.load %arg8[%c2, %c0_26, %c0_27] : memref<9x16x8xbf16, #tpu.memory_space<vmem>>, vector<1x16x8xbf16>
    %53 = vector.shape_cast %52 : vector<1x16x8xbf16> to vector<16x8xbf16>
    %cst_28 = arith.constant dense<0.000000e+00> : vector<16x256xf32>
    %54 = tpu.matmul %53, %51, %cst_28 {dimension_numbers = #tpu.dot_dimension_numbers<[1], [0], [0], [1], [0, 0, 1, 1], [], []>} : vector<16x8xbf16>, vector<8x256xbf16>, vector<16x256xf32> -> vector<16x256xf32>
    %55 = arith.addf %47, %54 : vector<16x256xf32>
    %56 = vector.extract_strided_slice %33 {offsets = [0, 16], sizes = [8, 256], strides = [1, 1]} : vector<8x290xbf16> to vector<8x256xbf16>
    %57 = vector.extract_strided_slice %2 {offsets = [3, 0], sizes = [1, 256], strides = [1, 1]} : vector<9x256xbf16> to vector<1x256xbf16>
    %58 = vector.broadcast %57 : vector<1x256xbf16> to vector<8x256xbf16>
    %59 = arith.mulf %56, %58 : vector<8x256xbf16>
    %c3 = arith.constant 3 : index
    %c0_29 = arith.constant 0 : index
    %c0_30 = arith.constant 0 : index
    %60 = vector.load %arg8[%c3, %c0_29, %c0_30] : memref<9x16x8xbf16, #tpu.memory_space<vmem>>, vector<1x16x8xbf16>
    %61 = vector.shape_cast %60 : vector<1x16x8xbf16> to vector<16x8xbf16>
    %cst_31 = arith.constant dense<0.000000e+00> : vector<16x256xf32>
    %62 = tpu.matmul %61, %59, %cst_31 {dimension_numbers = #tpu.dot_dimension_numbers<[1], [0], [0], [1], [0, 0, 1, 1], [], []>} : vector<16x8xbf16>, vector<8x256xbf16>, vector<16x256xf32> -> vector<16x256xf32>
    %63 = arith.addf %55, %62 : vector<16x256xf32>
    %c4 = arith.constant 4 : index
    %c0_32 = arith.constant 0 : index
    %c0_33 = arith.constant 0 : index
    %64 = vector.load %arg8[%c4, %c0_32, %c0_33] : memref<9x16x8xbf16, #tpu.memory_space<vmem>>, vector<1x16x8xbf16>
    %65 = vector.shape_cast %64 : vector<1x16x8xbf16> to vector<16x8xbf16>
    %cst_34 = arith.constant dense<0.000000e+00> : vector<16x256xf32>
    %66 = tpu.matmul %65, %31, %cst_34 {dimension_numbers = #tpu.dot_dimension_numbers<[1], [0], [0], [1], [0, 0, 1, 1], [], []>} : vector<16x8xbf16>, vector<8x256xbf16>, vector<16x256xf32> -> vector<16x256xf32>
    %67 = arith.addf %63, %66 : vector<16x256xf32>
    %68 = vector.extract_strided_slice %33 {offsets = [0, 18], sizes = [8, 256], strides = [1, 1]} : vector<8x290xbf16> to vector<8x256xbf16>
    %69 = vector.extract_strided_slice %2 {offsets = [5, 0], sizes = [1, 256], strides = [1, 1]} : vector<9x256xbf16> to vector<1x256xbf16>
    %70 = vector.broadcast %69 : vector<1x256xbf16> to vector<8x256xbf16>
    %71 = arith.mulf %68, %70 : vector<8x256xbf16>
    %c5 = arith.constant 5 : index
    %c0_35 = arith.constant 0 : index
    %c0_36 = arith.constant 0 : index
    %72 = vector.load %arg8[%c5, %c0_35, %c0_36] : memref<9x16x8xbf16, #tpu.memory_space<vmem>>, vector<1x16x8xbf16>
    %73 = vector.shape_cast %72 : vector<1x16x8xbf16> to vector<16x8xbf16>
    %cst_37 = arith.constant dense<0.000000e+00> : vector<16x256xf32>
    %74 = tpu.matmul %73, %71, %cst_37 {dimension_numbers = #tpu.dot_dimension_numbers<[1], [0], [0], [1], [0, 0, 1, 1], [], []>} : vector<16x8xbf16>, vector<8x256xbf16>, vector<16x256xf32> -> vector<16x256xf32>
    %75 = arith.addf %67, %74 : vector<16x256xf32>
    %76 = vector.extract_strided_slice %33 {offsets = [0, 32], sizes = [8, 256], strides = [1, 1]} : vector<8x290xbf16> to vector<8x256xbf16>
    %77 = vector.extract_strided_slice %2 {offsets = [6, 0], sizes = [1, 256], strides = [1, 1]} : vector<9x256xbf16> to vector<1x256xbf16>
    %78 = vector.broadcast %77 : vector<1x256xbf16> to vector<8x256xbf16>
    %79 = arith.mulf %76, %78 : vector<8x256xbf16>
    %c6 = arith.constant 6 : index
    %c0_38 = arith.constant 0 : index
    %c0_39 = arith.constant 0 : index
    %80 = vector.load %arg8[%c6, %c0_38, %c0_39] : memref<9x16x8xbf16, #tpu.memory_space<vmem>>, vector<1x16x8xbf16>
    %81 = vector.shape_cast %80 : vector<1x16x8xbf16> to vector<16x8xbf16>
    %cst_40 = arith.constant dense<0.000000e+00> : vector<16x256xf32>
    %82 = tpu.matmul %81, %79, %cst_40 {dimension_numbers = #tpu.dot_dimension_numbers<[1], [0], [0], [1], [0, 0, 1, 1], [], []>} : vector<16x8xbf16>, vector<8x256xbf16>, vector<16x256xf32> -> vector<16x256xf32>
    %83 = arith.addf %75, %82 : vector<16x256xf32>
    %84 = vector.extract_strided_slice %33 {offsets = [0, 33], sizes = [8, 256], strides = [1, 1]} : vector<8x290xbf16> to vector<8x256xbf16>
    %c7 = arith.constant 7 : index
    %c0_41 = arith.constant 0 : index
    %c0_42 = arith.constant 0 : index
    %85 = vector.load %arg8[%c7, %c0_41, %c0_42] : memref<9x16x8xbf16, #tpu.memory_space<vmem>>, vector<1x16x8xbf16>
    %86 = vector.shape_cast %85 : vector<1x16x8xbf16> to vector<16x8xbf16>
    %cst_43 = arith.constant dense<0.000000e+00> : vector<16x256xf32>
    %87 = tpu.matmul %86, %84, %cst_43 {dimension_numbers = #tpu.dot_dimension_numbers<[1], [0], [0], [1], [0, 0, 1, 1], [], []>} : vector<16x8xbf16>, vector<8x256xbf16>, vector<16x256xf32> -> vector<16x256xf32>
    %88 = arith.addf %83, %87 : vector<16x256xf32>
    %89 = vector.extract_strided_slice %33 {offsets = [0, 34], sizes = [8, 256], strides = [1, 1]} : vector<8x290xbf16> to vector<8x256xbf16>
    %90 = vector.extract_strided_slice %2 {offsets = [8, 0], sizes = [1, 256], strides = [1, 1]} : vector<9x256xbf16> to vector<1x256xbf16>
    %91 = vector.broadcast %90 : vector<1x256xbf16> to vector<8x256xbf16>
    %92 = arith.mulf %89, %91 : vector<8x256xbf16>
    %c8 = arith.constant 8 : index
    %c0_44 = arith.constant 0 : index
    %c0_45 = arith.constant 0 : index
    %93 = vector.load %arg8[%c8, %c0_44, %c0_45] : memref<9x16x8xbf16, #tpu.memory_space<vmem>>, vector<1x16x8xbf16>
    %94 = vector.shape_cast %93 : vector<1x16x8xbf16> to vector<16x8xbf16>
    %cst_46 = arith.constant dense<0.000000e+00> : vector<16x256xf32>
    %95 = tpu.matmul %94, %92, %cst_46 {dimension_numbers = #tpu.dot_dimension_numbers<[1], [0], [0], [1], [0, 0, 1, 1], [], []>} : vector<16x8xbf16>, vector<8x256xbf16>, vector<16x256xf32> -> vector<16x256xf32>
    %96 = arith.addf %88, %95 : vector<16x256xf32>
    %c0_47 = arith.constant 0 : index
    %c0_48 = arith.constant 0 : index
    %97 = vector.load %arg9[%c0_47, %c0_48] : memref<16x1xf32, #tpu.memory_space<vmem>>, vector<16x1xf32>
    %98 = vector.broadcast %97 : vector<16x1xf32> to vector<16x256xf32>
    %99 = arith.addf %96, %98 : vector<16x256xf32>
    %cst_49 = arith.constant dense<0.000000e+00> : vector<16xf32>
    %100 = vector.multi_reduction <add>, %99, %cst_49 [1] : vector<16x256xf32> to vector<16xf32>
    %101 = vector.shape_cast %100 : vector<16xf32> to vector<16x1xf32>
    %c0_50 = arith.constant 0 : index
    %c0_51 = arith.constant 0 : index
    %102 = vector.load %arg12[%c0_50, %c0_51] : memref<16x16xf32, #tpu.memory_space<vmem>>, vector<16x16xf32>
    %cst_52 = arith.constant dense<0.000000e+00> : vector<16x1xf32>
    %103 = tpu.matmul %102, %101, %cst_52 {dimension_numbers = #tpu.dot_dimension_numbers<[1], [0], [0], [1], [0, 0, 1, 1], [], []>} : vector<16x16xf32>, vector<16x1xf32>, vector<16x1xf32> -> vector<16x1xf32>
    %104 = vector.broadcast %103 : vector<16x1xf32> to vector<16x256xf32>
    %105 = arith.subf %99, %104 : vector<16x256xf32>
    %106 = arith.mulf %105, %105 : vector<16x256xf32>
    %cst_53 = arith.constant dense<0.000000e+00> : vector<16xf32>
    %107 = vector.multi_reduction <add>, %106, %cst_53 [1] : vector<16x256xf32> to vector<16xf32>
    %108 = vector.shape_cast %107 : vector<16xf32> to vector<16x1xf32>
    %c0_54 = arith.constant 0 : index
    %c0_55 = arith.constant 0 : index
    %109 = vector.load %arg12[%c0_54, %c0_55] : memref<16x16xf32, #tpu.memory_space<vmem>>, vector<16x16xf32>
    %cst_56 = arith.constant dense<0.000000e+00> : vector<16x1xf32>
    %110 = tpu.matmul %109, %108, %cst_56 {dimension_numbers = #tpu.dot_dimension_numbers<[1], [0], [0], [1], [0, 0, 1, 1], [], []>} : vector<16x16xf32>, vector<16x1xf32>, vector<16x1xf32> -> vector<16x1xf32>
    %cst_57 = arith.constant 9.99999974E-6 : f32
    %111 = vector.broadcast %cst_57 : f32 to vector<16x1xf32>
    %112 = arith.addf %110, %111 : vector<16x1xf32>
    %113 = math.rsqrt %112 : vector<16x1xf32>
    %c0_58 = arith.constant 0 : index
    %c0_59 = arith.constant 0 : index
    %114 = vector.load %arg10[%c0_58, %c0_59] : memref<16x1xf32, #tpu.memory_space<vmem>>, vector<16x1xf32>
    %115 = arith.mulf %113, %114 : vector<16x1xf32>
    %116 = vector.broadcast %115 : vector<16x1xf32> to vector<16x256xf32>
    %117 = arith.mulf %105, %116 : vector<16x256xf32>
    %c0_60 = arith.constant 0 : index
    %c0_61 = arith.constant 0 : index
    %118 = vector.load %arg11[%c0_60, %c0_61] : memref<16x1xf32, #tpu.memory_space<vmem>>, vector<16x1xf32>
    %119 = vector.broadcast %118 : vector<16x1xf32> to vector<16x256xf32>
    %120 = arith.addf %117, %119 : vector<16x256xf32>
    %c0_62 = arith.constant 0 : index
    %c0_63 = arith.constant 0 : index
    %c0_64 = arith.constant 0 : index
    %121 = vector.load %arg2[%c0_62, %c0_63, %c0_64] : memref<1x16x1xf32, #tpu.memory_space<vmem>>, vector<1x16x1xf32>
    %122 = vector.shape_cast %121 : vector<1x16x1xf32> to vector<16x1xf32>
    %cst_65 = arith.constant 1.000000e+00 : f32
    %123 = vector.broadcast %cst_65 : f32 to vector<16x1xf32>
    %124 = arith.addf %122, %123 : vector<16x1xf32>
    %125 = vector.broadcast %124 : vector<16x1xf32> to vector<16x256xf32>
    %126 = arith.mulf %120, %125 : vector<16x256xf32>
    %c0_66 = arith.constant 0 : index
    %c0_67 = arith.constant 0 : index
    %c0_68 = arith.constant 0 : index
    %127 = vector.load %arg3[%c0_66, %c0_67, %c0_68] : memref<1x16x1xf32, #tpu.memory_space<vmem>>, vector<1x16x1xf32>
    %128 = vector.shape_cast %127 : vector<1x16x1xf32> to vector<16x1xf32>
    %129 = vector.broadcast %128 : vector<16x1xf32> to vector<16x256xf32>
    %130 = arith.addf %126, %129 : vector<16x256xf32>
    %131 = arith.negf %130 : vector<16x256xf32>
    %132 = math.exp %131 : vector<16x256xf32>
    %cst_69 = arith.constant 1.000000e+00 : f32
    %133 = vector.broadcast %cst_69 : f32 to vector<16x256xf32>
    %134 = arith.addf %133, %132 : vector<16x256xf32>
    %135 = arith.divf %133, %134 : vector<16x256xf32>
    %136 = arith.mulf %130, %135 : vector<16x256xf32>
    %137 = arith.truncf %136 : vector<16x256xf32> to vector<16x256xbf16>
    %cst_70 = arith.constant 0.000000e+00 : bf16
    %138 = vector.broadcast %cst_70 : bf16 to vector<16x17xbf16>
    %139 = tpu.concatenate %138, %137, %138 in 1 : vector<16x17xbf16>, vector<16x256xbf16>, vector<16x17xbf16> -> vector<16x290xbf16>
    %cst_71 = arith.constant 0.000000e+00 : f32
    %140 = vector.broadcast %cst_71 : f32 to vector<16x256xf32>
    %141 = vector.extract_strided_slice %139 {offsets = [0, 0], sizes = [16, 256], strides = [1, 1]} : vector<16x290xbf16> to vector<16x256xbf16>
    %142 = vector.extract_strided_slice %2 {offsets = [0, 0], sizes = [1, 256], strides = [1, 1]} : vector<9x256xbf16> to vector<1x256xbf16>
    %143 = vector.broadcast %142 : vector<1x256xbf16> to vector<16x256xbf16>
    %144 = arith.mulf %141, %143 : vector<16x256xbf16>
    %c0_72 = arith.constant 0 : index
    %c0_73 = arith.constant 0 : index
    %c0_74 = arith.constant 0 : index
    %145 = vector.load %arg13[%c0_72, %c0_73, %c0_74] : memref<9x16x16xbf16, #tpu.memory_space<vmem>>, vector<1x16x16xbf16>
    %146 = vector.shape_cast %145 : vector<1x16x16xbf16> to vector<16x16xbf16>
    %cst_75 = arith.constant dense<0.000000e+00> : vector<16x256xf32>
    %147 = tpu.matmul %146, %144, %cst_75 {dimension_numbers = #tpu.dot_dimension_numbers<[1], [0], [0], [1], [0, 0, 1, 1], [], []>} : vector<16x16xbf16>, vector<16x256xbf16>, vector<16x256xf32> -> vector<16x256xf32>
    %148 = arith.addf %140, %147 : vector<16x256xf32>
    %149 = vector.extract_strided_slice %139 {offsets = [0, 1], sizes = [16, 256], strides = [1, 1]} : vector<16x290xbf16> to vector<16x256xbf16>
    %c1_76 = arith.constant 1 : index
    %c0_77 = arith.constant 0 : index
    %c0_78 = arith.constant 0 : index
    %150 = vector.load %arg13[%c1_76, %c0_77, %c0_78] : memref<9x16x16xbf16, #tpu.memory_space<vmem>>, vector<1x16x16xbf16>
    %151 = vector.shape_cast %150 : vector<1x16x16xbf16> to vector<16x16xbf16>
    %cst_79 = arith.constant dense<0.000000e+00> : vector<16x256xf32>
    %152 = tpu.matmul %151, %149, %cst_79 {dimension_numbers = #tpu.dot_dimension_numbers<[1], [0], [0], [1], [0, 0, 1, 1], [], []>} : vector<16x16xbf16>, vector<16x256xbf16>, vector<16x256xf32> -> vector<16x256xf32>
    %153 = arith.addf %148, %152 : vector<16x256xf32>
    %154 = vector.extract_strided_slice %139 {offsets = [0, 2], sizes = [16, 256], strides = [1, 1]} : vector<16x290xbf16> to vector<16x256xbf16>
    %155 = vector.extract_strided_slice %2 {offsets = [2, 0], sizes = [1, 256], strides = [1, 1]} : vector<9x256xbf16> to vector<1x256xbf16>
    %156 = vector.broadcast %155 : vector<1x256xbf16> to vector<16x256xbf16>
    %157 = arith.mulf %154, %156 : vector<16x256xbf16>
    %c2_80 = arith.constant 2 : index
    %c0_81 = arith.constant 0 : index
    %c0_82 = arith.constant 0 : index
    %158 = vector.load %arg13[%c2_80, %c0_81, %c0_82] : memref<9x16x16xbf16, #tpu.memory_space<vmem>>, vector<1x16x16xbf16>
    %159 = vector.shape_cast %158 : vector<1x16x16xbf16> to vector<16x16xbf16>
    %cst_83 = arith.constant dense<0.000000e+00> : vector<16x256xf32>
    %160 = tpu.matmul %159, %157, %cst_83 {dimension_numbers = #tpu.dot_dimension_numbers<[1], [0], [0], [1], [0, 0, 1, 1], [], []>} : vector<16x16xbf16>, vector<16x256xbf16>, vector<16x256xf32> -> vector<16x256xf32>
    %161 = arith.addf %153, %160 : vector<16x256xf32>
    %162 = vector.extract_strided_slice %139 {offsets = [0, 16], sizes = [16, 256], strides = [1, 1]} : vector<16x290xbf16> to vector<16x256xbf16>
    %163 = vector.extract_strided_slice %2 {offsets = [3, 0], sizes = [1, 256], strides = [1, 1]} : vector<9x256xbf16> to vector<1x256xbf16>
    %164 = vector.broadcast %163 : vector<1x256xbf16> to vector<16x256xbf16>
    %165 = arith.mulf %162, %164 : vector<16x256xbf16>
    %c3_84 = arith.constant 3 : index
    %c0_85 = arith.constant 0 : index
    %c0_86 = arith.constant 0 : index
    %166 = vector.load %arg13[%c3_84, %c0_85, %c0_86] : memref<9x16x16xbf16, #tpu.memory_space<vmem>>, vector<1x16x16xbf16>
    %167 = vector.shape_cast %166 : vector<1x16x16xbf16> to vector<16x16xbf16>
    %cst_87 = arith.constant dense<0.000000e+00> : vector<16x256xf32>
    %168 = tpu.matmul %167, %165, %cst_87 {dimension_numbers = #tpu.dot_dimension_numbers<[1], [0], [0], [1], [0, 0, 1, 1], [], []>} : vector<16x16xbf16>, vector<16x256xbf16>, vector<16x256xf32> -> vector<16x256xf32>
    %169 = arith.addf %161, %168 : vector<16x256xf32>
    %c4_88 = arith.constant 4 : index
    %c0_89 = arith.constant 0 : index
    %c0_90 = arith.constant 0 : index
    %170 = vector.load %arg13[%c4_88, %c0_89, %c0_90] : memref<9x16x16xbf16, #tpu.memory_space<vmem>>, vector<1x16x16xbf16>
    %171 = vector.shape_cast %170 : vector<1x16x16xbf16> to vector<16x16xbf16>
    %cst_91 = arith.constant dense<0.000000e+00> : vector<16x256xf32>
    %172 = tpu.matmul %171, %137, %cst_91 {dimension_numbers = #tpu.dot_dimension_numbers<[1], [0], [0], [1], [0, 0, 1, 1], [], []>} : vector<16x16xbf16>, vector<16x256xbf16>, vector<16x256xf32> -> vector<16x256xf32>
    %173 = arith.addf %169, %172 : vector<16x256xf32>
    %174 = vector.extract_strided_slice %139 {offsets = [0, 18], sizes = [16, 256], strides = [1, 1]} : vector<16x290xbf16> to vector<16x256xbf16>
    %175 = vector.extract_strided_slice %2 {offsets = [5, 0], sizes = [1, 256], strides = [1, 1]} : vector<9x256xbf16> to vector<1x256xbf16>
    %176 = vector.broadcast %175 : vector<1x256xbf16> to vector<16x256xbf16>
    %177 = arith.mulf %174, %176 : vector<16x256xbf16>
    %c5_92 = arith.constant 5 : index
    %c0_93 = arith.constant 0 : index
    %c0_94 = arith.constant 0 : index
    %178 = vector.load %arg13[%c5_92, %c0_93, %c0_94] : memref<9x16x16xbf16, #tpu.memory_space<vmem>>, vector<1x16x16xbf16>
    %179 = vector.shape_cast %178 : vector<1x16x16xbf16> to vector<16x16xbf16>
    %cst_95 = arith.constant dense<0.000000e+00> : vector<16x256xf32>
    %180 = tpu.matmul %179, %177, %cst_95 {dimension_numbers = #tpu.dot_dimension_numbers<[1], [0], [0], [1], [0, 0, 1, 1], [], []>} : vector<16x16xbf16>, vector<16x256xbf16>, vector<16x256xf32> -> vector<16x256xf32>
    %181 = arith.addf %173, %180 : vector<16x256xf32>
    %182 = vector.extract_strided_slice %139 {offsets = [0, 32], sizes = [16, 256], strides = [1, 1]} : vector<16x290xbf16> to vector<16x256xbf16>
    %183 = vector.extract_strided_slice %2 {offsets = [6, 0], sizes = [1, 256], strides = [1, 1]} : vector<9x256xbf16> to vector<1x256xbf16>
    %184 = vector.broadcast %183 : vector<1x256xbf16> to vector<16x256xbf16>
    %185 = arith.mulf %182, %184 : vector<16x256xbf16>
    %c6_96 = arith.constant 6 : index
    %c0_97 = arith.constant 0 : index
    %c0_98 = arith.constant 0 : index
    %186 = vector.load %arg13[%c6_96, %c0_97, %c0_98] : memref<9x16x16xbf16, #tpu.memory_space<vmem>>, vector<1x16x16xbf16>
    %187 = vector.shape_cast %186 : vector<1x16x16xbf16> to vector<16x16xbf16>
    %cst_99 = arith.constant dense<0.000000e+00> : vector<16x256xf32>
    %188 = tpu.matmul %187, %185, %cst_99 {dimension_numbers = #tpu.dot_dimension_numbers<[1], [0], [0], [1], [0, 0, 1, 1], [], []>} : vector<16x16xbf16>, vector<16x256xbf16>, vector<16x256xf32> -> vector<16x256xf32>
    %189 = arith.addf %181, %188 : vector<16x256xf32>
    %190 = vector.extract_strided_slice %139 {offsets = [0, 33], sizes = [16, 256], strides = [1, 1]} : vector<16x290xbf16> to vector<16x256xbf16>
    %c7_100 = arith.constant 7 : index
    %c0_101 = arith.constant 0 : index
    %c0_102 = arith.constant 0 : index
    %191 = vector.load %arg13[%c7_100, %c0_101, %c0_102] : memref<9x16x16xbf16, #tpu.memory_space<vmem>>, vector<1x16x16xbf16>
    %192 = vector.shape_cast %191 : vector<1x16x16xbf16> to vector<16x16xbf16>
    %cst_103 = arith.constant dense<0.000000e+00> : vector<16x256xf32>
    %193 = tpu.matmul %192, %190, %cst_103 {dimension_numbers = #tpu.dot_dimension_numbers<[1], [0], [0], [1], [0, 0, 1, 1], [], []>} : vector<16x16xbf16>, vector<16x256xbf16>, vector<16x256xf32> -> vector<16x256xf32>
    %194 = arith.addf %189, %193 : vector<16x256xf32>
    %195 = vector.extract_strided_slice %139 {offsets = [0, 34], sizes = [16, 256], strides = [1, 1]} : vector<16x290xbf16> to vector<16x256xbf16>
    %196 = vector.extract_strided_slice %2 {offsets = [8, 0], sizes = [1, 256], strides = [1, 1]} : vector<9x256xbf16> to vector<1x256xbf16>
    %197 = vector.broadcast %196 : vector<1x256xbf16> to vector<16x256xbf16>
    %198 = arith.mulf %195, %197 : vector<16x256xbf16>
    %c8_104 = arith.constant 8 : index
    %c0_105 = arith.constant 0 : index
    %c0_106 = arith.constant 0 : index
    %199 = vector.load %arg13[%c8_104, %c0_105, %c0_106] : memref<9x16x16xbf16, #tpu.memory_space<vmem>>, vector<1x16x16xbf16>
    %200 = vector.shape_cast %199 : vector<1x16x16xbf16> to vector<16x16xbf16>
    %cst_107 = arith.constant dense<0.000000e+00> : vector<16x256xf32>
    %201 = tpu.matmul %200, %198, %cst_107 {dimension_numbers = #tpu.dot_dimension_numbers<[1], [0], [0], [1], [0, 0, 1, 1], [], []>} : vector<16x16xbf16>, vector<16x256xbf16>, vector<16x256xf32> -> vector<16x256xf32>
    %202 = arith.addf %194, %201 : vector<16x256xf32>
    %c0_108 = arith.constant 0 : index
    %c0_109 = arith.constant 0 : index
    %203 = vector.load %arg14[%c0_108, %c0_109] : memref<16x1xf32, #tpu.memory_space<vmem>>, vector<16x1xf32>
    %204 = vector.broadcast %203 : vector<16x1xf32> to vector<16x256xf32>
    %205 = arith.addf %202, %204 : vector<16x256xf32>
    %c0_110 = arith.constant 0 : index
    %c0_111 = arith.constant 0 : index
    %206 = vector.load %arg15[%c0_110, %c0_111] : memref<16x8xbf16, #tpu.memory_space<vmem>>, vector<16x8xbf16>
    %cst_112 = arith.constant dense<0.000000e+00> : vector<16x256xf32>
    %207 = tpu.matmul %206, %1, %cst_112 {dimension_numbers = #tpu.dot_dimension_numbers<[1], [0], [0], [1], [0, 0, 1, 1], [], []>} : vector<16x8xbf16>, vector<8x256xbf16>, vector<16x256xf32> -> vector<16x256xf32>
    %c0_113 = arith.constant 0 : index
    %c0_114 = arith.constant 0 : index
    %208 = vector.load %arg16[%c0_113, %c0_114] : memref<16x1xf32, #tpu.memory_space<vmem>>, vector<16x1xf32>
    %209 = vector.broadcast %208 : vector<16x1xf32> to vector<16x256xf32>
    %210 = arith.addf %207, %209 : vector<16x256xf32>
    %211 = arith.addf %205, %210 : vector<16x256xf32>
    %c0_115 = arith.constant 0 : index
    %c0_116 = arith.constant 0 : index
    %c0_117 = arith.constant 0 : index
    %212 = vector.load %arg17[%c0_115, %c0_116, %c0_117] : memref<1x16x256xf32, #tpu.memory_space<vmem>>, vector<1x16x256xf32>
    %213 = vector.shape_cast %212 : vector<1x16x256xf32> to vector<16x256xf32>
    %214 = vector.shape_cast %211 : vector<16x256xf32> to vector<1x16x256xf32>
    tpu.vector_store %arg17[%c0_115, %c0_116, %c0_117], %214 {strides = array<i32>} : memref<1x16x256xf32, #tpu.memory_space<vmem>>, vector<1x16x256xf32>,
    return
  }
  func.func @transform_0(%arg0: i32) -> (i32, i32, i32) {
    %c0_i32 = arith.constant 0 : i32
    %c0_i32_0 = arith.constant 0 : i32
    %c0_i32_1 = arith.constant 0 : i32
    return %arg0, %c0_i32, %c0_i32_0 : i32, i32, i32
  }
  func.func @transform_1(%arg0: i32) -> (i32, i32, i32) {
    %c0_i32 = arith.constant 0 : i32
    %c0_i32_0 = arith.constant 0 : i32
    %c0_i32_1 = arith.constant 0 : i32
    return %arg0, %c0_i32, %c0_i32_0 : i32, i32, i32
  }
  func.func @transform_2(%arg0: i32) -> (i32, i32, i32) {
    %c0_i32 = arith.constant 0 : i32
    %c0_i32_0 = arith.constant 0 : i32
    %c0_i32_1 = arith.constant 0 : i32
    return %arg0, %c0_i32, %c0_i32_0 : i32, i32, i32
  }
  func.func @transform_3(%arg0: i32) -> (i32, i32) {
    %c0_i32 = arith.constant 0 : i32
    %c0_i32_0 = arith.constant 0 : i32
    %c0_i32_1 = arith.constant 0 : i32
    return %c0_i32, %c0_i32_0 : i32, i32
  }
  func.func @transform_4(%arg0: i32) -> (i32, i32) {
    %c0_i32 = arith.constant 0 : i32
    %c0_i32_0 = arith.constant 0 : i32
    %c0_i32_1 = arith.constant 0 : i32
    return %c0_i32, %c0_i32_0 : i32, i32
  }
  func.func @transform_5(%arg0: i32) -> (i32, i32) {
    %c0_i32 = arith.constant 0 : i32
    %c0_i32_0 = arith.constant 0 : i32
    %c0_i32_1 = arith.constant 0 : i32
    return %c0_i32, %c0_i32_0 : i32, i32
  }
  func.func @transform_6(%arg0: i32) -> (i32, i32) {
    %c0_i32 = arith.constant 0 : i32
    %c0_i32_0 = arith.constant 0 : i32
    %c0_i32_1 = arith.constant 0 : i32
    return %c0_i32, %c0_i32_0 : i32, i32
  }
  func.func @transform_7(%arg0: i32) -> (i32, i32, i32) {
    %c0_i32 = arith.constant 0 : i32
    %c0_i32_0 = arith.constant 0 : i32
    %c0_i32_1 = arith.constant 0 : i32
    %c0_i32_2 = arith.constant 0 : i32
    return %c0_i32, %c0_i32_0, %c0_i32_1 : i32, i32, i32
  }
  func.func @transform_8(%arg0: i32) -> (i32, i32) {
    %c0_i32 = arith.constant 0 : i32
    %c0_i32_0 = arith.constant 0 : i32
    %c0_i32_1 = arith.constant 0 : i32
    return %c0_i32, %c0_i32_0 : i32, i32
  }
  func.func @transform_9(%arg0: i32) -> (i32, i32) {
    %c0_i32 = arith.constant 0 : i32
    %c0_i32_0 = arith.constant 0 : i32
    %c0_i32_1 = arith.constant 0 : i32
    return %c0_i32, %c0_i32_0 : i32, i32
  }
  func.func @transform_10(%arg0: i32) -> (i32, i32) {
    %c0_i32 = arith.constant 0 : i32
    %c0_i32_0 = arith.constant 0 : i32
    %c0_i32_1 = arith.constant 0 : i32
    return %c0_i32, %c0_i32_0 : i32, i32
  }
  func.func @transform_11(%arg0: i32) -> (i32, i32) {
    %c0_i32 = arith.constant 0 : i32
    %c0_i32_0 = arith.constant 0 : i32
    %c0_i32_1 = arith.constant 0 : i32
    return %c0_i32, %c0_i32_0 : i32, i32
  }
  func.func @transform_12(%arg0: i32) -> (i32, i32, i32) {
    %c0_i32 = arith.constant 0 : i32
    %c0_i32_0 = arith.constant 0 : i32
    %c0_i32_1 = arith.constant 0 : i32
    %c0_i32_2 = arith.constant 0 : i32
    return %c0_i32, %c0_i32_0, %c0_i32_1 : i32, i32, i32
  }
  func.func @transform_13(%arg0: i32) -> (i32, i32) {
    %c0_i32 = arith.constant 0 : i32
    %c0_i32_0 = arith.constant 0 : i32
    %c0_i32_1 = arith.constant 0 : i32
    return %c0_i32, %c0_i32_0 : i32, i32
  }
  func.func @transform_14(%arg0: i32) -> (i32, i32) {
    %c0_i32 = arith.constant 0 : i32
    %c0_i32_0 = arith.constant 0 : i32
    %c0_i32_1 = arith.constant 0 : i32
    return %c0_i32, %c0_i32_0 : i32, i32
  }
  func.func @transform_15(%arg0: i32) -> (i32, i32) {
    %c0_i32 = arith.constant 0 : i32
    %c0_i32_0 = arith.constant 0 : i32
    %c0_i32_1 = arith.constant 0 : i32
    return %c0_i32, %c0_i32_0 : i32, i32
  }
  func.func @transform_16(%arg0: i32) -> (i32, i32, i32) {
    %c0_i32 = arith.constant 0 : i32
    %c0_i32_0 = arith.constant 0 : i32
    %c0_i32_1 = arith.constant 0 : i32
    return %arg0, %c0_i32, %c0_i32_0 : i32, i32, i32
  }
}

</mosaic_0001>

<llo_original>
// kernel: tpu_custom_call.1
$region0: #{tpu_custom_call.1}
  #allocation0 [shape = 'u32[]', space=smem, size = 0x4, offset = 0x4, fixed_abs, tag = 'smem constant byte address 0x4 - core index']
  #allocation1 [shape = 'u32[72,128]{1,0:T(1,128)}', space=vmem, size = 0x9000, scoped, tag = 'internal scratch']
  %s0 = inlined_call_operand.vmem [shape: bf16[2,8,256], index: 0, kind: input, shape index: {}]
  %s1 = inlined_call_operand.vmem [shape: f32[2,16,1], index: 1, kind: input, shape index: {}]
  %s2 = inlined_call_operand.vmem [shape: f32[2,16,1], index: 2, kind: input, shape index: {}]
  %s3 = inlined_call_operand.vmem [shape: bf16[9,256], index: 3, kind: input, shape index: {}]
  %s4 = inlined_call_operand.vmem [shape: f32[8,1], index: 4, kind: input, shape index: {}]
  %s5 = inlined_call_operand.vmem [shape: f32[8,1], index: 5, kind: input, shape index: {}]
  %s6 = inlined_call_operand.vmem [shape: f32[8,8], index: 6, kind: input, shape index: {}]
  %s7 = inlined_call_operand.vmem [shape: bf16[9,16,8], index: 7, kind: input, shape index: {}]
  %s8 = inlined_call_operand.vmem [shape: f32[16,1], index: 8, kind: input, shape index: {}]
  %s9 = inlined_call_operand.vmem [shape: f32[16,1], index: 9, kind: input, shape index: {}]
  %s10 = inlined_call_operand.vmem [shape: f32[16,1], index: 10, kind: input, shape index: {}]
  %s11 = inlined_call_operand.vmem [shape: f32[16,16], index: 11, kind: input, shape index: {}]
  %s12 = inlined_call_operand.vmem [shape: bf16[9,16,16], index: 12, kind: input, shape index: {}]
  %s13 = inlined_call_operand.vmem [shape: f32[16,1], index: 13, kind: input, shape index: {}]
  %s14 = inlined_call_operand.vmem [shape: bf16[16,8], index: 14, kind: input, shape index: {}]
  %s15 = inlined_call_operand.vmem [shape: f32[16,1], index: 15, kind: input, shape index: {}]
  %s16 = inlined_call_operand.hbm [shape: f32[2,16,256], index: 16, kind: output, shape index: {}]
  %s17 = sld [smem:[#allocation0]]
  $region97: #{tpu_custom_call.1} parent=0
    _
  %s19 = ssub.s32 1, %s17
  %s20 = scalar_select 0, %s19, %s17
  $region1: #{tpu_custom_call.1} parent=0
    #allocation2 [shape = 'u8[32768]{0}', space=vmem, size = 0x8000, scoped, tag = 'output window, operand 0']
    #allocation3 [shape = 's32[2]{0}', space=sflag, size = 0x8, scoped, tag = 'scoped memory for tpu_custom_call.1']
    %21 = vsyncpa [#allocation3], 0
    %s22 = scalar_lea.sflag [#allocation3], 1
    %23 = vsyncpa %s22, 0
    loop: start=0, step=1, limit=4
    $region2: #{tpu_custom_call.1} parent=1 // loop_pre_header
      _
    $region3: #{tpu_custom_call.1} parent=1 // loop_header
      %s25 = sphi 0, %s29
      %p26 = scmp.ge.s32.totalorder %s25, 4
      %s35 = sphi 0, %s37
      %s38 = sphi 0, %s35
      %s39 = sphi 0, %s38
      %s55 = sphi 0, %s39
      %s61 = sphi 0, %s63
      %s64 = sphi 0, %s61
      %s65 = sphi 0, %s64
      %s81 = sphi 0, %s65
      %s87 = sphi 0, %s89
      %s90 = sphi 0, %s87
      %s91 = sphi 0, %s90
      %s107 = sphi 0, %s91
      %s111 = sphi 0, %s111
      %s113 = sphi 0, %s111
      %s114 = sphi 0, %s113
      %s128 = sphi 0, %s114
      %s132 = sphi 0, %s132
      %s134 = sphi 0, %s132
      %s135 = sphi 0, %s134
      %s149 = sphi 0, %s135
      %s153 = sphi 0, %s153
      %s155 = sphi 0, %s153
      %s156 = sphi 0, %s155
      %s170 = sphi 0, %s156
      %s174 = sphi 0, %s174
      %s176 = sphi 0, %s174
      %s177 = sphi 0, %s176
      %s191 = sphi 0, %s177
      %s195 = sphi 0, %s195
      %s197 = sphi 0, %s195
      %s198 = sphi 0, %s197
      %s212 = sphi 0, %s198
      %s216 = sphi 0, %s216
      %s218 = sphi 0, %s216
      %s219 = sphi 0, %s218
      %s233 = sphi 0, %s219
      %s237 = sphi 0, %s237
      %s239 = sphi 0, %s237
      %s240 = sphi 0, %s239
      %s254 = sphi 0, %s240
      %s258 = sphi 0, %s258
      %s260 = sphi 0, %s258
      %s261 = sphi 0, %s260
      %s275 = sphi 0, %s261
      %s279 = sphi 0, %s279
      %s281 = sphi 0, %s279
      %s282 = sphi 0, %s281
      %s296 = sphi 0, %s282
      %s300 = sphi 0, %s300
      %s302 = sphi 0, %s300
      %s303 = sphi 0, %s302
      %s317 = sphi 0, %s303
      %s321 = sphi 0, %s321
      %s323 = sphi 0, %s321
      %s324 = sphi 0, %s323
      %s338 = sphi 0, %s324
      %s342 = sphi 0, %s342
      %s344 = sphi 0, %s342
      %s345 = sphi 0, %s344
      %s359 = sphi 0, %s345
      %s363 = sphi 0, %s363
      %s365 = sphi 0, %s363
      %s366 = sphi 0, %s365
      %s380 = sphi 0, %s366
      %s386 = sphi 0, %s388
      %s389 = sphi 0, %s386
      %s390 = sphi 0, %s389
      %s406 = sphi 0, %s390
    $region4: #{tpu_custom_call.1} parent=1 // loop_header_branch
      %28 = sbr.rel (%p26) target = $region8
    $region5: #{tpu_custom_call.1} parent=1 // loop_body
      %s30 = ssub.s32 %s25, 1
      %s31 = ssub.s32 %s25, 2
      %s32 = sadd.s32 %s25, 1
      %s33 = ssub.s32 %s25, %s32
      %p34 = scmp.eq.s32.totalorder %s33, 0
      %s36 = sadd.s32 %s35, 1
      %s37 = scalar_select %p34, %s35, %s36
      %p40 = pneg %p34
      %p41 = scmp.eq.s32.totalorder %s25, 1
      %p42 = por %p40, %p41
      %p43 = scmp.ne.s32.totalorder %s35, %s38
      %p44 = scmp.eq.s32.totalorder %s25, 0
      %p45 = por %p43, %p44
      %p46 = scmp.ne.s32.totalorder %s35, %s38
      %p47 = scmp.eq.s32.totalorder %s30, 1
      %p48 = por %p46, %p47
      %p49 = scmp.ne.s32.totalorder %s38, %s39
      %p50 = scmp.eq.s32.totalorder %s30, 0
      %p51 = por %p49, %p50
      %p52 = scmp.ne.s32.totalorder %s38, %s39
      %p53 = scmp.eq.s32.totalorder %s31, 1
      %p54 = por %p52, %p53
      %p56 = scmp.ne.s32.totalorder %s39, %s55
      %p57 = scmp.eq.s32.totalorder %s31, 0
      %p58 = por %p56, %p57
      %s59 = ssub.s32 %s25, %s32
      %p60 = scmp.eq.s32.totalorder %s59, 0
      %s62 = sadd.s32 %s61, 1
      %s63 = scalar_select %p60, %s61, %s62
      %p66 = pneg %p60
      %p67 = scmp.eq.s32.totalorder %s25, 1
      %p68 = por %p66, %p67
      %p69 = scmp.ne.s32.totalorder %s61, %s64
      %p70 = scmp.eq.s32.totalorder %s25, 0
      %p71 = por %p69, %p70
      %p72 = scmp.ne.s32.totalorder %s61, %s64
      %p73 = scmp.eq.s32.totalorder %s30, 1
      %p74 = por %p72, %p73
      %p75 = scmp.ne.s32.totalorder %s64, %s65
      %p76 = scmp.eq.s32.totalorder %s30, 0
      %p77 = por %p75, %p76
      %p78 = scmp.ne.s32.totalorder %s64, %s65
      %p79 = scmp.eq.s32.totalorder %s31, 1
      %p80 = por %p78, %p79
      %p82 = scmp.ne.s32.totalorder %s65, %s81
      %p83 = scmp.eq.s32.totalorder %s31, 0
      %p84 = por %p82, %p83
      %s85 = ssub.s32 %s25, %s32
      %p86 = scmp.eq.s32.totalorder %s85, 0
      %s88 = sadd.s32 %s87, 1
      %s89 = scalar_select %p86, %s87, %s88
      %p92 = pneg %p86
      %p93 = scmp.eq.s32.totalorder %s25, 1
      %p94 = por %p92, %p93
      %p95 = scmp.ne.s32.totalorder %s87, %s90
      %p96 = scmp.eq.s32.totalorder %s25, 0
      %p97 = por %p95, %p96
      %p98 = scmp.ne.s32.totalorder %s87, %s90
      %p99 = scmp.eq.s32.totalorder %s30, 1
      %p100 = por %p98, %p99
      %p101 = scmp.ne.s32.totalorder %s90, %s91
      %p102 = scmp.eq.s32.totalorder %s30, 0
      %p103 = por %p101, %p102
      %p104 = scmp.ne.s32.totalorder %s90, %s91
      %p105 = scmp.eq.s32.totalorder %s31, 1
      %p106 = por %p104, %p105
      %p108 = scmp.ne.s32.totalorder %s91, %s107
      %p109 = scmp.eq.s32.totalorder %s31, 0
      %p110 = por %p108, %p109
      %s112 = sadd.s32 %s111, 1
      %p115 = scmp.eq.s32.totalorder %s25, 1
      %p116 = scmp.ne.s32.totalorder %s111, %s113
      %p117 = scmp.eq.s32.totalorder %s25, 0
      %p118 = por %p116, %p117
      %p119 = scmp.ne.s32.totalorder %s111, %s113
      %p120 = scmp.eq.s32.totalorder %s30, 1
      %p121 = por %p119, %p120
      %p122 = scmp.ne.s32.totalorder %s113, %s114
      %p123 = scmp.eq.s32.totalorder %s30, 0
      %p124 = por %p122, %p123
      %p125 = scmp.ne.s32.totalorder %s113, %s114
      %p126 = scmp.eq.s32.totalorder %s31, 1
      %p127 = por %p125, %p126
      %p129 = scmp.ne.s32.totalorder %s114, %s128
      %p130 = scmp.eq.s32.totalorder %s31, 0
      %p131 = por %p129, %p130
      %s133 = sadd.s32 %s132, 1
      %p136 = scmp.eq.s32.totalorder %s25, 1
      %p137 = scmp.ne.s32.totalorder %s132, %s134
      %p138 = scmp.eq.s32.totalorder %s25, 0
      %p139 = por %p137, %p138
      %p140 = scmp.ne.s32.totalorder %s132, %s134
      %p141 = scmp.eq.s32.totalorder %s30, 1
      %p142 = por %p140, %p141
      %p143 = scmp.ne.s32.totalorder %s134, %s135
      %p144 = scmp.eq.s32.totalorder %s30, 0
      %p145 = por %p143, %p144
      %p146 = scmp.ne.s32.totalorder %s134, %s135
      %p147 = scmp.eq.s32.totalorder %s31, 1
      %p148 = por %p146, %p147
      %p150 = scmp.ne.s32.totalorder %s135, %s149
      %p151 = scmp.eq.s32.totalorder %s31, 0
      %p152 = por %p150, %p151
      %s154 = sadd.s32 %s153, 1
      %p157 = scmp.eq.s32.totalorder %s25, 1
      %p158 = scmp.ne.s32.totalorder %s153, %s155
      %p159 = scmp.eq.s32.totalorder %s25, 0
      %p160 = por %p158, %p159
      %p161 = scmp.ne.s32.totalorder %s153, %s155
      %p162 = scmp.eq.s32.totalorder %s30, 1
      %p163 = por %p161, %p162
      %p164 = scmp.ne.s32.totalorder %s155, %s156
      %p165 = scmp.eq.s32.totalorder %s30, 0
      %p166 = por %p164, %p165
      %p167 = scmp.ne.s32.totalorder %s155, %s156
      %p168 = scmp.eq.s32.totalorder %s31, 1
      %p169 = por %p167, %p168
      %p171 = scmp.ne.s32.totalorder %s156, %s170
      %p172 = scmp.eq.s32.totalorder %s31, 0
      %p173 = por %p171, %p172
      %s175 = sadd.s32 %s174, 1
      %p178 = scmp.eq.s32.totalorder %s25, 1
      %p179 = scmp.ne.s32.totalorder %s174, %s176
      %p180 = scmp.eq.s32.totalorder %s25, 0
      %p181 = por %p179, %p180
      %p182 = scmp.ne.s32.totalorder %s174, %s176
      %p183 = scmp.eq.s32.totalorder %s30, 1
      %p184 = por %p182, %p183
      %p185 = scmp.ne.s32.totalorder %s176, %s177
      %p186 = scmp.eq.s32.totalorder %s30, 0
      %p187 = por %p185, %p186
      %p188 = scmp.ne.s32.totalorder %s176, %s177
      %p189 = scmp.eq.s32.totalorder %s31, 1
      %p190 = por %p188, %p189
      %p192 = scmp.ne.s32.totalorder %s177, %s191
      %p193 = scmp.eq.s32.totalorder %s31, 0
      %p194 = por %p192, %p193
      %s196 = sadd.s32 %s195, 1
      %p199 = scmp.eq.s32.totalorder %s25, 1
      %p200 = scmp.ne.s32.totalorder %s195, %s197
      %p201 = scmp.eq.s32.totalorder %s25, 0
      %p202 = por %p200, %p201
      %p203 = scmp.ne.s32.totalorder %s195, %s197
      %p204 = scmp.eq.s32.totalorder %s30, 1
      %p205 = por %p203, %p204
      %p206 = scmp.ne.s32.totalorder %s197, %s198
      %p207 = scmp.eq.s32.totalorder %s30, 0
      %p208 = por %p206, %p207
      %p209 = scmp.ne.s32.totalorder %s197, %s198
      %p210 = scmp.eq.s32.totalorder %s31, 1
      %p211 = por %p209, %p210
      %p213 = scmp.ne.s32.totalorder %s198, %s212
      %p214 = scmp.eq.s32.totalorder %s31, 0
      %p215 = por %p213, %p214
      %s217 = sadd.s32 %s216, 1
      %p220 = scmp.eq.s32.totalorder %s25, 1
      %p221 = scmp.ne.s32.totalorder %s216, %s218
      %p222 = scmp.eq.s32.totalorder %s25, 0
      %p223 = por %p221, %p222
      %p224 = scmp.ne.s32.totalorder %s216, %s218
      %p225 = scmp.eq.s32.totalorder %s30, 1
      %p226 = por %p224, %p225
      %p227 = scmp.ne.s32.totalorder %s218, %s219
      %p228 = scmp.eq.s32.totalorder %s30, 0
      %p229 = por %p227, %p228
      %p230 = scmp.ne.s32.totalorder %s218, %s219
      %p231 = scmp.eq.s32.totalorder %s31, 1
      %p232 = por %p230, %p231
      %p234 = scmp.ne.s32.totalorder %s219, %s233
      %p235 = scmp.eq.s32.totalorder %s31, 0
      %p236 = por %p234, %p235
      %s238 = sadd.s32 %s237, 1
      %p241 = scmp.eq.s32.totalorder %s25, 1
      %p242 = scmp.ne.s32.totalorder %s237, %s239
      %p243 = scmp.eq.s32.totalorder %s25, 0
      %p244 = por %p242, %p243
      %p245 = scmp.ne.s32.totalorder %s237, %s239
      %p246 = scmp.eq.s32.totalorder %s30, 1
      %p247 = por %p245, %p246
      %p248 = scmp.ne.s32.totalorder %s239, %s240
      %p249 = scmp.eq.s32.totalorder %s30, 0
      %p250 = por %p248, %p249
      %p251 = scmp.ne.s32.totalorder %s239, %s240
      %p252 = scmp.eq.s32.totalorder %s31, 1
      %p253 = por %p251, %p252
      %p255 = scmp.ne.s32.totalorder %s240, %s254
      %p256 = scmp.eq.s32.totalorder %s31, 0
      %p257 = por %p255, %p256
      %s259 = sadd.s32 %s258, 1
      %p262 = scmp.eq.s32.totalorder %s25, 1
      %p263 = scmp.ne.s32.totalorder %s258, %s260
      %p264 = scmp.eq.s32.totalorder %s25, 0
      %p265 = por %p263, %p264
      %p266 = scmp.ne.s32.totalorder %s258, %s260
      %p267 = scmp.eq.s32.totalorder %s30, 1
      %p268 = por %p266, %p267
      %p269 = scmp.ne.s32.totalorder %s260, %s261
      %p270 = scmp.eq.s32.totalorder %s30, 0
      %p271 = por %p269, %p270
      %p272 = scmp.ne.s32.totalorder %s260, %s261
      %p273 = scmp.eq.s32.totalorder %s31, 1
      %p274 = por %p272, %p273
      %p276 = scmp.ne.s32.totalorder %s261, %s275
      %p277 = scmp.eq.s32.totalorder %s31, 0
      %p278 = por %p276, %p277
      %s280 = sadd.s32 %s279, 1
      %p283 = scmp.eq.s32.totalorder %s25, 1
      %p284 = scmp.ne.s32.totalorder %s279, %s281
      %p285 = scmp.eq.s32.totalorder %s25, 0
      %p286 = por %p284, %p285
      %p287 = scmp.ne.s32.totalorder %s279, %s281
      %p288 = scmp.eq.s32.totalorder %s30, 1
      %p289 = por %p287, %p288
      %p290 = scmp.ne.s32.totalorder %s281, %s282
      %p291 = scmp.eq.s32.totalorder %s30, 0
      %p292 = por %p290, %p291
      %p293 = scmp.ne.s32.totalorder %s281, %s282
      %p294 = scmp.eq.s32.totalorder %s31, 1
      %p295 = por %p293, %p294
      %p297 = scmp.ne.s32.totalorder %s282, %s296
      %p298 = scmp.eq.s32.totalorder %s31, 0
      %p299 = por %p297, %p298
      %s301 = sadd.s32 %s300, 1
      %p304 = scmp.eq.s32.totalorder %s25, 1
      %p305 = scmp.ne.s32.totalorder %s300, %s302
      %p306 = scmp.eq.s32.totalorder %s25, 0
      %p307 = por %p305, %p306
      %p308 = scmp.ne.s32.totalorder %s300, %s302
      %p309 = scmp.eq.s32.totalorder %s30, 1
      %p310 = por %p308, %p309
      %p311 = scmp.ne.s32.totalorder %s302, %s303
      %p312 = scmp.eq.s32.totalorder %s30, 0
      %p313 = por %p311, %p312
      %p314 = scmp.ne.s32.totalorder %s302, %s303
      %p315 = scmp.eq.s32.totalorder %s31, 1
      %p316 = por %p314, %p315
      %p318 = scmp.ne.s32.totalorder %s303, %s317
      %p319 = scmp.eq.s32.totalorder %s31, 0
      %p320 = por %p318, %p319
      %s322 = sadd.s32 %s321, 1
      %p325 = scmp.eq.s32.totalorder %s25, 1
      %p326 = scmp.ne.s32.totalorder %s321, %s323
      %p327 = scmp.eq.s32.totalorder %s25, 0
      %p328 = por %p326, %p327
      %p329 = scmp.ne.s32.totalorder %s321, %s323
      %p330 = scmp.eq.s32.totalorder %s30, 1
      %p331 = por %p329, %p330
      %p332 = scmp.ne.s32.totalorder %s323, %s324
      %p333 = scmp.eq.s32.totalorder %s30, 0
      %p334 = por %p332, %p333
      %p335 = scmp.ne.s32.totalorder %s323, %s324
      %p336 = scmp.eq.s32.totalorder %s31, 1
      %p337 = por %p335, %p336
      %p339 = scmp.ne.s32.totalorder %s324, %s338
      %p340 = scmp.eq.s32.totalorder %s31, 0
      %p341 = por %p339, %p340
      %s343 = sadd.s32 %s342, 1
      %p346 = scmp.eq.s32.totalorder %s25, 1
      %p347 = scmp.ne.s32.totalorder %s342, %s344
      %p348 = scmp.eq.s32.totalorder %s25, 0
      %p349 = por %p347, %p348
      %p350 = scmp.ne.s32.totalorder %s342, %s344
      %p351 = scmp.eq.s32.totalorder %s30, 1
      %p352 = por %p350, %p351
      %p353 = scmp.ne.s32.totalorder %s344, %s345
      %p354 = scmp.eq.s32.totalorder %s30, 0
      %p355 = por %p353, %p354
      %p356 = scmp.ne.s32.totalorder %s344, %s345
      %p357 = scmp.eq.s32.totalorder %s31, 1
      %p358 = por %p356, %p357
      %p360 = scmp.ne.s32.totalorder %s345, %s359
      %p361 = scmp.eq.s32.totalorder %s31, 0
      %p362 = por %p360, %p361
      %s364 = sadd.s32 %s363, 1
      %p367 = scmp.eq.s32.totalorder %s25, 1
      %p368 = scmp.ne.s32.totalorder %s363, %s365
      %p369 = scmp.eq.s32.totalorder %s25, 0
      %p370 = por %p368, %p369
      %p371 = scmp.ne.s32.totalorder %s363, %s365
      %p372 = scmp.eq.s32.totalorder %s30, 1
      %p373 = por %p371, %p372
      %p374 = scmp.ne.s32.totalorder %s365, %s366
      %p375 = scmp.eq.s32.totalorder %s30, 0
      %p376 = por %p374, %p375
      %p377 = scmp.ne.s32.totalorder %s365, %s366
      %p378 = scmp.eq.s32.totalorder %s31, 1
      %p379 = por %p377, %p378
      %p381 = scmp.ne.s32.totalorder %s366, %s380
      %p382 = scmp.eq.s32.totalorder %s31, 0
      %p383 = por %p381, %p382
      %s384 = ssub.s32 %s25, %s32
      %p385 = scmp.eq.s32.totalorder %s384, 0
      %s387 = sadd.s32 %s386, 1
      %s388 = scalar_select %p385, %s386, %s387
      %p391 = pneg %p385
      %p392 = scmp.eq.s32.totalorder %s25, 1
      %p393 = por %p391, %p392
      %p394 = scmp.ne.s32.totalorder %s386, %s389
      %p395 = scmp.eq.s32.totalorder %s25, 0
      %p396 = por %p394, %p395
      %p397 = scmp.ne.s32.totalorder %s386, %s389
      %p398 = scmp.eq.s32.totalorder %s30, 1
      %p399 = por %p397, %p398
      %p400 = scmp.ne.s32.totalorder %s389, %s390
      %p401 = scmp.eq.s32.totalorder %s30, 0
      %p402 = por %p400, %p401
      %p403 = scmp.ne.s32.totalorder %s389, %s390
      %p404 = scmp.eq.s32.totalorder %s31, 1
      %p405 = por %p403, %p404
      %p407 = scmp.ne.s32.totalorder %s390, %s406
      %p408 = scmp.eq.s32.totalorder %s31, 0
      %p409 = por %p407, %p408
      %p410 = scmp.le.s32.totalorder 1, %s25
      %p411 = scmp.lt.s32.totalorder %s25, 3
      %p412 = pnand %p410, %p411
      %p413 = pneg %p412
      // Predicated region
      $region9: #{tpu_custom_call.1} parent=5 // pred_check
        _
      $region10: #{tpu_custom_call.1} parent=5 // pred_check_branch
        %415 = sbr.rel (%p412) target = $region12
      $region11: #{tpu_custom_call.1} parent=5 // pred_region
        %s416 = ssub.s32 %s25, 1
        // Predicated region
        $region13: #{tpu_custom_call.1} parent=11 // pred_check
          %p417 = pneg %p124
        $region14: #{tpu_custom_call.1} parent=11 // pred_check_branch
          %419 = sbr.rel (%p417) target = $region16
        $region15: #{tpu_custom_call.1} parent=11 // pred_region
          _
        $region16: #{tpu_custom_call.1} parent=11 // pred_fallthru
          _
        // Predicated region
        $region17: #{tpu_custom_call.1} parent=11 // pred_check
          %p420 = pneg %p145
        $region18: #{tpu_custom_call.1} parent=11 // pred_check_branch
          %422 = sbr.rel (%p420) target = $region20
        $region19: #{tpu_custom_call.1} parent=11 // pred_region
          _
        $region20: #{tpu_custom_call.1} parent=11 // pred_fallthru
          _
        // Predicated region
        $region21: #{tpu_custom_call.1} parent=11 // pred_check
          %p423 = pneg %p166
        $region22: #{tpu_custom_call.1} parent=11 // pred_check_branch
          %425 = sbr.rel (%p423) target = $region24
        $region23: #{tpu_custom_call.1} parent=11 // pred_region
          _
        $region24: #{tpu_custom_call.1} parent=11 // pred_fallthru
          _
        // Predicated region
        $region25: #{tpu_custom_call.1} parent=11 // pred_check
          %p426 = pneg %p187
        $region26: #{tpu_custom_call.1} parent=11 // pred_check_branch
          %428 = sbr.rel (%p426) target = $region28
        $region27: #{tpu_custom_call.1} parent=11 // pred_region
          _
        $region28: #{tpu_custom_call.1} parent=11 // pred_fallthru
          _
        // Predicated region
        $region29: #{tpu_custom_call.1} parent=11 // pred_check
          %p429 = pneg %p208
        $region30: #{tpu_custom_call.1} parent=11 // pred_check_branch
          %431 = sbr.rel (%p429) target = $region32
        $region31: #{tpu_custom_call.1} parent=11 // pred_region
          _
        $region32: #{tpu_custom_call.1} parent=11 // pred_fallthru
          _
        // Predicated region
        $region33: #{tpu_custom_call.1} parent=11 // pred_check
          %p432 = pneg %p229
        $region34: #{tpu_custom_call.1} parent=11 // pred_check_branch
          %434 = sbr.rel (%p432) target = $region36
        $region35: #{tpu_custom_call.1} parent=11 // pred_region
          _
        $region36: #{tpu_custom_call.1} parent=11 // pred_fallthru
          _
        // Predicated region
        $region37: #{tpu_custom_call.1} parent=11 // pred_check
          %p435 = pneg %p250
        $region38: #{tpu_custom_call.1} parent=11 // pred_check_branch
          %437 = sbr.rel (%p435) target = $region40
        $region39: #{tpu_custom_call.1} parent=11 // pred_region
          _
        $region40: #{tpu_custom_call.1} parent=11 // pred_fallthru
          _
        // Predicated region
        $region41: #{tpu_custom_call.1} parent=11 // pred_check
          %p438 = pneg %p271
        $region42: #{tpu_custom_call.1} parent=11 // pred_check_branch
          %440 = sbr.rel (%p438) target = $region44
        $region43: #{tpu_custom_call.1} parent=11 // pred_region
          _
        $region44: #{tpu_custom_call.1} parent=11 // pred_fallthru
          _
        // Predicated region
        $region45: #{tpu_custom_call.1} parent=11 // pred_check
          %p441 = pneg %p292
        $region46: #{tpu_custom_call.1} parent=11 // pred_check_branch
          %443 = sbr.rel (%p441) target = $region48
        $region47: #{tpu_custom_call.1} parent=11 // pred_region
          _
        $region48: #{tpu_custom_call.1} parent=11 // pred_fallthru
          _
        // Predicated region
        $region49: #{tpu_custom_call.1} parent=11 // pred_check
          %p444 = pneg %p313
        $region50: #{tpu_custom_call.1} parent=11 // pred_check_branch
          %446 = sbr.rel (%p444) target = $region52
        $region51: #{tpu_custom_call.1} parent=11 // pred_region
          _
        $region52: #{tpu_custom_call.1} parent=11 // pred_fallthru
          _
        // Predicated region
        $region53: #{tpu_custom_call.1} parent=11 // pred_check
          %p447 = pneg %p334
        $region54: #{tpu_custom_call.1} parent=11 // pred_check_branch
          %449 = sbr.rel (%p447) target = $region56
        $region55: #{tpu_custom_call.1} parent=11 // pred_region
          _
        $region56: #{tpu_custom_call.1} parent=11 // pred_fallthru
          _
        // Predicated region
        $region57: #{tpu_custom_call.1} parent=11 // pred_check
          %p450 = pneg %p355
        $region58: #{tpu_custom_call.1} parent=11 // pred_check_branch
          %452 = sbr.rel (%p450) target = $region60
        $region59: #{tpu_custom_call.1} parent=11 // pred_region
          _
        $region60: #{tpu_custom_call.1} parent=11 // pred_fallthru
          _
        // Predicated region
        $region61: #{tpu_custom_call.1} parent=11 // pred_check
          %p453 = pneg %p376
        $region62: #{tpu_custom_call.1} parent=11 // pred_check_branch
          %455 = sbr.rel (%p453) target = $region64
        $region63: #{tpu_custom_call.1} parent=11 // pred_region
          _
        $region64: #{tpu_custom_call.1} parent=11 // pred_fallthru
          _
      $region12: #{tpu_custom_call.1} parent=5 // pred_fallthru
        _
      %p456 = scmp.lt.s32.totalorder %s25, 2
      // Predicated region
      $region65: #{tpu_custom_call.1} parent=5 // pred_check
        %p457 = pneg %p456
      $region66: #{tpu_custom_call.1} parent=5 // pred_check_branch
        %459 = sbr.rel (%p457) target = $region68
      $region67: #{tpu_custom_call.1} parent=5 // pred_region
        // Predicated region
        $region69: #{tpu_custom_call.1} parent=67 // pred_check
          %p460 = pneg %p45
        $region70: #{tpu_custom_call.1} parent=67 // pred_check_branch
          %462 = sbr.rel (%p460) target = $region72
        $region71: #{tpu_custom_call.1} parent=67 // pred_region
          %p463 = scmp.lt.s32.totalorder %s25, 1
          %s464 = scalar_select %p463, %s25, 1
          %s465 = smul.addr %s464, 2
          %s466 = smul.addr %s465, 4
          %s467 = scalar_lea.vmem %s0, %s466
        $region72: #{tpu_custom_call.1} parent=67 // pred_fallthru
          _
        // Predicated region
        $region73: #{tpu_custom_call.1} parent=67 // pred_check
          %p468 = pneg %p71
        $region74: #{tpu_custom_call.1} parent=67 // pred_check_branch
          %470 = sbr.rel (%p468) target = $region76
        $region75: #{tpu_custom_call.1} parent=67 // pred_region
          %p471 = scmp.lt.s32.totalorder %s25, 1
          %s472 = scalar_select %p471, %s25, 1
          %s473 = smul.addr %s472, 2
          %s474 = smul.addr %s473, 8
          %s475 = scalar_lea.vmem %s1, %s474
        $region76: #{tpu_custom_call.1} parent=67 // pred_fallthru
          _
        // Predicated region
        $region77: #{tpu_custom_call.1} parent=67 // pred_check
          %p476 = pneg %p97
        $region78: #{tpu_custom_call.1} parent=67 // pred_check_branch
          %478 = sbr.rel (%p476) target = $region80
        $region79: #{tpu_custom_call.1} parent=67 // pred_region
          %p479 = scmp.lt.s32.totalorder %s25, 1
          %s480 = scalar_select %p479, %s25, 1
          %s481 = smul.addr %s480, 2
          %s482 = smul.addr %s481, 8
          %s483 = scalar_lea.vmem %s2, %s482
        $region80: #{tpu_custom_call.1} parent=67 // pred_fallthru
          _
      $region68: #{tpu_custom_call.1} parent=5 // pred_fallthru
        _
      %p484 = scmp.le.s32.totalorder 1, %s25
      %p485 = scmp.lt.s32.totalorder %s25, 3
      %p486 = pnand %p484, %p485
      %p487 = pneg %p486
      // Predicated region
      $region81: #{tpu_custom_call.1} parent=5 // pred_check
        _
      $region82: #{tpu_custom_call.1} parent=5 // pred_check_branch
        %489 = sbr.rel (%p486) target = $region84
      $region83: #{tpu_custom_call.1} parent=5 // pred_region
        %s490 = ssub.s32 %s25, 1
        %p491 = scmp.lt.s32.totalorder %s30, 1
        %s492 = scalar_select %p491, %s30, 1
        %s493 = smul.addr %s492, 2
        %s494 = smul.addr %s493, 4
        %s495 = scalar_lea.vmem %s0, %s494
        %p496 = pneg %p51
        %p497 = pneg %p48
        %p498 = scmp.lt.s32.totalorder %s30, 1
        %s499 = scalar_select %p498, %s30, 1
        %s500 = smul.addr %s499, 2
        %s501 = smul.addr %s500, 8
        %s502 = scalar_lea.vmem %s1, %s501
        %p503 = pneg %p77
        %p504 = pneg %p74
        %p505 = scmp.lt.s32.totalorder %s30, 1
        %s506 = scalar_select %p505, %s30, 1
        %s507 = smul.addr %s506, 2
        %s508 = smul.addr %s507, 8
        %s509 = scalar_lea.vmem %s2, %s508
        %p510 = pneg %p103
        %p511 = pneg %p100
        %p512 = pneg %p124
        %p513 = pneg %p121
        %p514 = pneg %p145
        %p515 = pneg %p142
        %p516 = pneg %p166
        %p517 = pneg %p163
        %p518 = pneg %p187
        %p519 = pneg %p184
        %p520 = pneg %p208
        %p521 = pneg %p205
        %p522 = pneg %p229
        %p523 = pneg %p226
        %p524 = pneg %p250
        %p525 = pneg %p247
        %p526 = pneg %p271
        %p527 = pneg %p268
        %p528 = pneg %p292
        %p529 = pneg %p289
        %p530 = pneg %p313
        %p531 = pneg %p310
        %p532 = pneg %p334
        %p533 = pneg %p331
        %p534 = pneg %p355
        %p535 = pneg %p352
        %p536 = pneg %p376
        %p537 = pneg %p373
        %p538 = pneg %p402
        %p539 = pneg %p399
        %s540 = sand.u32 %s389, 1
        %s541 = scalar_lea.sflag [#allocation3], %s540
        %s542 = sand.u32 %s389, 1
        %s543 = smul.addr %s542, 32
        %s544 = scalar_lea.vmem [#allocation2], %s543
        %p545 = scmp.lt.s32.totalorder %s30, 1
        %s546 = scalar_select %p545, %s30, 1
        %s547 = smul.addr %s546, 2
        %s548 = smul.addr %s547, 4
        %s549 = scalar_lea.vmem %s0, %s548
        %p550 = scmp.lt.s32.totalorder %s30, 1
        %s551 = scalar_select %p550, %s30, 1
        %s552 = smul.addr %s551, 2
        %s553 = smul.addr %s552, 8
        %s554 = scalar_lea.vmem %s1, %s553
        %p555 = scmp.lt.s32.totalorder %s30, 1
        %s556 = scalar_select %p555, %s30, 1
        %s557 = smul.addr %s556, 2
        %s558 = smul.addr %s557, 8
        %s559 = scalar_lea.vmem %s2, %s558
        %v561 = vld [vmem:[%s549] sm:$0xff]
        %v562 = vld [vmem:[%s3] sm:$0xff]
        %v563 = vld [vmem:[%s3 + $0x8] sm:$0x11]
        %v564 = vunpack.c.l.bf16 %v561
        %v565 = vunpack.c.h.bf16 %v561
        %v566 = vadd.f32 %v564, %v565
        %567 = vadd.xlane.f32.xlu0 %v566
        %v568 = vpop.xlane.xlu0 %567
        %v569 = vld [vmem:[%s6] sm:$0xff]
        %vm570 = vcmask 64512
        %v572 = vsel %vm570, %v569, 0
        %574 = vmatpush.msra.mxu0 0.0
        %575 = vmatpush.msra.mxu0 0.0
        %576 = vmatpush.msra.mxu0 0.0
        %577 = vmatpush.msra.mxu0 0.0
        %578 = vmatpush.msra.mxu0 0.0
        %579 = vmatpush.msra.mxu0 0.0
        %580 = vmatpush.msra.mxu0 0.0
        %581 = vmatpush.msra.mxu0 0.0
        %582 = vmatpush.msra.mxu0 0.0
        %583 = vmatpush.msra.mxu0 0.0
        %584 = vmatpush.msra.mxu0 0.0
        %585 = vmatpush.msra.mxu0 0.0
        %586 = vmatpush.msra.mxu0 0.0
        %587 = vmatpush.msra.mxu0 0.0
        %588 = vmatpush.msra.mxu0 0.0
        %589 = vmatpush.msra.mxu0 %v568
        %590 = vmatmul.f32.gmra.mxu0 %v572
        %v591 = vpop.f32.mrf.mxu0
        %v592 = vadd.f32 0.0, %v591
        %593 = vdwg.mxu0
        %595 = vset.pattern.permute.xlu0 0
        %596 = vperm.xlu0 %595, %v592
        %v597 = vpop.permute.xlu0 %596
        %v599 = vsub.f32 %v564, %v597
        %v600 = vsub.f32 %v565, %v597
        %v601 = vmul.f32 %v599, %v599
        %v602 = vmul.f32 %v600, %v600
        %v603 = vadd.f32 %v601, %v602
        %604 = vadd.xlane.f32.xlu0 %v603
        %v605 = vpop.xlane.xlu0 %604
        %606 = vmatpush.msra.mxu0 0.0
        %607 = vmatpush.msra.mxu0 0.0
        %608 = vmatpush.msra.mxu0 0.0
        %609 = vmatpush.msra.mxu0 0.0
        %610 = vmatpush.msra.mxu0 0.0
        %611 = vmatpush.msra.mxu0 0.0
        %612 = vmatpush.msra.mxu0 0.0
        %613 = vmatpush.msra.mxu0 0.0
        %614 = vmatpush.msra.mxu0 0.0
        %615 = vmatpush.msra.mxu0 0.0
        %616 = vmatpush.msra.mxu0 0.0
        %617 = vmatpush.msra.mxu0 0.0
        %618 = vmatpush.msra.mxu0 0.0
        %619 = vmatpush.msra.mxu0 0.0
        %620 = vmatpush.msra.mxu0 0.0
        %621 = vmatpush.msra.mxu0 %v605
        %622 = vmatmul.f32.gmra.mxu0 %v572
        %v623 = vpop.f32.mrf.mxu0
        %v624 = vadd.f32 1e-05, %v623
        %625 = vdwg.mxu0
        %v626 = vrsqrt.pop %v624
        %v627 = vmul.f32 %v626, %v624
        %v628 = vmul.f32 %v627, %v626
        %v629 = vmul.f32 0.5, %v628
        %v630 = vsub.f32 1.5, %v629
        %v631 = vmul.f32 %v626, %v630
        %vm632 = vweird.f32 %v624
        %vm633 = vweird.f32 %v626
        %vm634 = vmor %vm632, %vm633
        %v635 = vsel %vm634, %v626, %v631
        %v636 = vld [vmem:[%s4] sm:$0xff]
        %v637 = vmul.f32 %v635, %v636
        %639 = vset.pattern.permute.xlu0 0
        %640 = vperm.xlu0 %639, %v637
        %v641 = vpop.permute.xlu0 %640
        %v643 = vmul.f32 %v599, %v641
        %v644 = vmul.f32 %v600, %v641
        %v645 = vld [vmem:[%s5] sm:$0xff]
        %647 = vset.pattern.permute.xlu0 0
        %648 = vperm.xlu0 %647, %v645
        %v649 = vpop.permute.xlu0 %648
        %v651 = vadd.f32 %v643, %v649
        %v652 = vadd.f32 %v644, %v649
        %v653 = vxor.u32 %v651, 2147483648
        %v654 = vxor.u32 %v652, 2147483648
        %v655 = vmul.f32 %v653, 1.442695
        %v656 = vpow.pop %v655
        %v657 = vmul.f32 %v654, 1.442695
        %v658 = vpow.pop %v657
        %v659 = vadd.f32 %v656, 1.0
        %v660 = vadd.f32 %v658, 1.0
        %v661 = vrcp.pop %v659
        %v662 = vmul.f32 %v659, %v661
        %v663 = vsub.f32 1.0, %v662
        %v664 = vmul.f32 %v661, %v663
        %v665 = vadd.f32 %v661, %v664
        %vm666 = vweird.f32 %v659
        %vm667 = vweird.f32 %v661
        %vm668 = vmor %vm666, %vm667
        %v669 = vsel %vm668, %v661, %v665
        %v670 = vand.u32 2147483647, %v659
        %vm671 = vcmp.eq.f32.partialorder %v670, 8.507059e+37
        %v672 = vand.u32 %v659, 2147483648
        %v673 = vor.u32 1.1754944e-38, %v672
        %v674 = vsel %vm671, %v673, %v669
        %v675 = vmul.f32 1.0, %v674
        %v676 = vrcp.pop %v660
        %v677 = vmul.f32 %v660, %v676
        %v678 = vsub.f32 1.0, %v677
        %v679 = vmul.f32 %v676, %v678
        %v680 = vadd.f32 %v676, %v679
        %vm681 = vweird.f32 %v660
        %vm682 = vweird.f32 %v676
        %vm683 = vmor %vm681, %vm682
        %v684 = vsel %vm683, %v676, %v680
        %v685 = vand.u32 2147483647, %v660
        %vm686 = vcmp.eq.f32.partialorder %v685, 8.507059e+37
        %v687 = vand.u32 %v660, 2147483648
        %v688 = vor.u32 1.1754944e-38, %v687
        %v689 = vsel %vm686, %v688, %v684
        %v690 = vmul.f32 1.0, %v689
        %v691 = vmul.f32 %v651, %v675
        %v692 = vmul.f32 %v652, %v690
        %v693 = vpack.c.bf16 %v692, %v691
        %v695 = vunpack.c.l.b16 %v693
        %v696 = vunpack.c.h.b16 %v693
        %v697 = vpack.c.b16 %v695, %v695
        %v698 = vpack.c.b16 %v696, %v696
        %699 = vrot.lane.b32.xlu0 %v697, 17
        %v700 = vpop.permute.xlu0 %699
        %701 = vrot.lane.b32.xlu0 %v698, 17
        %v702 = vpop.permute.xlu0 %701
        %vm703 = vcmask 138240
        %v704 = vsel %vm703, %v700, %v702
        %vm706 = vcmask 138240
        %v709 = vsel %vm706, 0, %v700
        %v712 = vsel %vm706, %v702, 0
        %v715 = vunpack.c.l.b16 %v562
        %v716 = vunpack.c.h.b16 %v562
        %v717 = vpack.c.b16 %v715, %v715
        %v718 = vpack.c.b16 %v716, %v716
        %v720 = vpack.i.b16 %v717, %v717
        %v722 = vperm.slane %v720, 0
        %v724 = vpack.i.b16 %v718, %v718
        %v726 = vperm.slane %v724, 0
        %v727 = vunpack.c.l.bf16 %v709
        %v728 = vunpack.c.l.bf16 %v704
        %v729 = vunpack.c.l.bf16 %v722
        %v730 = vunpack.c.l.bf16 %v726
        %v731 = vmul.f32 %v727, %v729
        %v732 = vmul.f32 %v728, %v730
        %v733 = vpack.c.bf16 %v731, %v731
        %v734 = vpack.c.bf16 %v732, %v732
        %v735 = vld [vmem:[%s7] sm:$0xf]
        %v736 = vld [vmem:[%s7 + $0x4] sm:$0xf]
        %s737 = scalar_lea.vmem %s7, 8
        %v738 = vld [vmem:[%s737] sm:$0xf]
        %v739 = vld [vmem:[%s737 + $0x4] sm:$0xf]
        %v742 = vunpack.c.l.b16 %v738
        %v743 = vunpack.c.l.b16 %v739
        %v744 = vpack.c.b16 %v743, %v742
        %747 = vrot.lane.b32.xlu0 %v709, 127
        %v748 = vpop.permute.xlu0 %747
        %749 = vrot.lane.b32.xlu0 %v704, 127
        %v750 = vpop.permute.xlu0 %749
        %751 = vrot.lane.b32.xlu0 %v712, 127
        %v752 = vpop.permute.xlu0 %751
        %vm753 = vcmask 1039360
        %v754 = vsel %vm753, %v748, %v750
        %v755 = vsel %vm753, %v750, %v752
        %v757 = vsel %vm570, %v744, 0
        %vm759 = vcmask 1043456
        %v761 = vsel %vm759, %v754, 0
        %v764 = vsel %vm759, %v755, 0
        %766 = vmatpush.bf16.msra.mxu0 0
        %767 = vmatpush.bf16.msra.mxu0 0
        %768 = vmatpush.bf16.msra.mxu0 0
        %769 = vmatpush.bf16.msra.mxu0 0
        %770 = vmatpush.bf16.msra.mxu0 0
        %771 = vmatpush.bf16.msra.mxu0 0
        %772 = vmatpush.bf16.msra.mxu0 0
        %773 = vmatpush.bf16.msra.mxu0 %v761
        %774 = vmatmul.bf16.gmra.mxu0 %v757
        %v775 = vpop.f32.mrf.mxu0
        %v776 = vadd.f32 0.0, %v775
        %v777 = vpop.f32.mrf.mxu0
        %v778 = vadd.f32 0.0, %v777
        %779 = vdwg.mxu0
        %780 = vmatpush.bf16.msra.mxu0 0
        %781 = vmatpush.bf16.msra.mxu0 0
        %782 = vmatpush.bf16.msra.mxu0 0
        %783 = vmatpush.bf16.msra.mxu0 0
        %784 = vmatpush.bf16.msra.mxu0 0
        %785 = vmatpush.bf16.msra.mxu0 0
        %786 = vmatpush.bf16.msra.mxu0 0
        %787 = vmatpush.bf16.msra.mxu0 %v764
        %788 = vmatmul.bf16.gmra.mxu0 %v757
        %v789 = vpop.f32.mrf.mxu0
        %v790 = vadd.f32 0.0, %v789
        %v791 = vpop.f32.mrf.mxu0
        %v792 = vadd.f32 0.0, %v791
        %793 = vdwg.mxu0
        %v796 = vunpack.c.l.b16 %v735
        %v797 = vunpack.c.l.b16 %v736
        %v798 = vpack.c.b16 %v797, %v796
        %v800 = vsel %vm570, %v798, 0
        %v803 = vsel %vm759, %v733, 0
        %v806 = vsel %vm759, %v734, 0
        %808 = vmatpush.bf16.msra.mxu0 0
        %809 = vmatpush.bf16.msra.mxu0 0
        %810 = vmatpush.bf16.msra.mxu0 0
        %811 = vmatpush.bf16.msra.mxu0 0
        %812 = vmatpush.bf16.msra.mxu0 0
        %813 = vmatpush.bf16.msra.mxu0 0
        %814 = vmatpush.bf16.msra.mxu0 0
        %815 = vmatpush.bf16.msra.mxu0 %v803
        %816 = vmatmul.bf16.gmra.mxu0 %v800
        %v817 = vpop.f32.mrf.mxu0
        %v818 = vadd.f32 %v776, %v817
        %v819 = vpop.f32.mrf.mxu0
        %v820 = vadd.f32 %v778, %v819
        %821 = vdwg.mxu0
        %822 = vmatpush.bf16.msra.mxu0 0
        %823 = vmatpush.bf16.msra.mxu0 0
        %824 = vmatpush.bf16.msra.mxu0 0
        %825 = vmatpush.bf16.msra.mxu0 0
        %826 = vmatpush.bf16.msra.mxu0 0
        %827 = vmatpush.bf16.msra.mxu0 0
        %828 = vmatpush.bf16.msra.mxu0 0
        %829 = vmatpush.bf16.msra.mxu0 %v806
        %830 = vmatmul.bf16.gmra.mxu0 %v800
        %v831 = vpop.f32.mrf.mxu0
        %v832 = vadd.f32 %v790, %v831
        %v833 = vpop.f32.mrf.mxu0
        %v834 = vadd.f32 %v792, %v833
        %835 = vdwg.mxu0
        %v836 = vperm.slane %v720, 1
        %v837 = vperm.slane %v724, 1
        %v838 = vunpack.c.l.bf16 %v712
        %v839 = vunpack.c.l.bf16 %v836
        %v840 = vunpack.c.l.bf16 %v837
        %843 = vrot.lane.b32.xlu0 %v839, 2
        %v844 = vpop.permute.xlu0 %843
        %845 = vrot.lane.b32.xlu0 %v840, 2
        %v846 = vpop.permute.xlu0 %845
        %vm847 = vcmask 15360
        %v848 = vsel %vm847, %v844, %v846
        %v852 = vmul.f32 %v727, %v844
        %v853 = vmul.f32 %v728, %v848
        %v854 = vmul.f32 %v838, %v846
        %v855 = vpack.c.bf16 %v852, %v852
        %v856 = vpack.c.bf16 %v853, %v853
        %v857 = vpack.c.bf16 %v854, %v854
        %s858 = scalar_lea.vmem %s7, 16
        %v859 = vld [vmem:[%s858] sm:$0xf]
        %v860 = vld [vmem:[%s858 + $0x4] sm:$0xf]
        %v863 = vunpack.c.l.b16 %v859
        %v864 = vunpack.c.l.b16 %v860
        %v865 = vpack.c.b16 %v864, %v863
        %869 = vrot.lane.b32.xlu0 %v855, 126
        %v870 = vpop.permute.xlu0 %869
        %871 = vrot.lane.b32.xlu0 %v856, 126
        %v872 = vpop.permute.xlu0 %871
        %873 = vrot.lane.b32.xlu0 %v857, 126
        %v874 = vpop.permute.xlu0 %873
        %vm875 = vcmask 1031168
        %v876 = vsel %vm875, %v870, %v872
        %v877 = vsel %vm875, %v872, %v874
        %v879 = vsel %vm570, %v865, 0
        %v882 = vsel %vm759, %v876, 0
        %v885 = vsel %vm759, %v877, 0
        %887 = vmatpush.bf16.msra.mxu0 0
        %888 = vmatpush.bf16.msra.mxu0 0
        %889 = vmatpush.bf16.msra.mxu0 0
        %890 = vmatpush.bf16.msra.mxu0 0
        %891 = vmatpush.bf16.msra.mxu0 0
        %892 = vmatpush.bf16.msra.mxu0 0
        %893 = vmatpush.bf16.msra.mxu0 0
        %894 = vmatpush.bf16.msra.mxu0 %v882
        %895 = vmatmul.bf16.gmra.mxu0 %v879
        %v896 = vpop.f32.mrf.mxu0
        %v897 = vadd.f32 0.0, %v896
        %v898 = vpop.f32.mrf.mxu0
        %v899 = vadd.f32 0.0, %v898
        %900 = vdwg.mxu0
        %901 = vmatpush.bf16.msra.mxu0 0
        %902 = vmatpush.bf16.msra.mxu0 0
        %903 = vmatpush.bf16.msra.mxu0 0
        %904 = vmatpush.bf16.msra.mxu0 0
        %905 = vmatpush.bf16.msra.mxu0 0
        %906 = vmatpush.bf16.msra.mxu0 0
        %907 = vmatpush.bf16.msra.mxu0 0
        %908 = vmatpush.bf16.msra.mxu0 %v885
        %909 = vmatmul.bf16.gmra.mxu0 %v879
        %v910 = vpop.f32.mrf.mxu0
        %v911 = vadd.f32 0.0, %v910
        %v912 = vpop.f32.mrf.mxu0
        %v913 = vadd.f32 0.0, %v912
        %914 = vdwg.mxu0
        %v915 = vadd.f32 %v818, %v897
        %v916 = vadd.f32 %v832, %v911
        %v917 = vadd.f32 %v820, %v899
        %v918 = vadd.f32 %v834, %v913
        %v919 = vshrl.u32 %v717, 16
        %v920 = vpack.i.b16 %v919, %v919
        %v922 = vperm.slane %v920, 1
        %v923 = vshrl.u32 %v718, 16
        %v924 = vpack.i.b16 %v923, %v923
        %v926 = vperm.slane %v924, 1
        %v927 = vunpack.c.l.bf16 %v922
        %v928 = vunpack.c.l.bf16 %v926
        %931 = vrot.lane.b32.xlu0 %v927, 16
        %v932 = vpop.permute.xlu0 %931
        %933 = vrot.lane.b32.xlu0 %v928, 16
        %v934 = vpop.permute.xlu0 %933
        %vm935 = vcmask 130048
        %v936 = vsel %vm935, %v932, %v934
        %v940 = vmul.f32 %v727, %v932
        %v941 = vmul.f32 %v728, %v936
        %v942 = vmul.f32 %v838, %v934
        %v943 = vpack.c.bf16 %v940, %v940
        %v944 = vpack.c.bf16 %v941, %v941
        %v945 = vpack.c.bf16 %v942, %v942
        %s946 = scalar_lea.vmem %s7, 24
        %v947 = vld [vmem:[%s946] sm:$0xf]
        %v948 = vld [vmem:[%s946 + $0x4] sm:$0xf]
        %v951 = vunpack.c.l.b16 %v947
        %v952 = vunpack.c.l.b16 %v948
        %v953 = vpack.c.b16 %v952, %v951
        %957 = vrot.lane.b32.xlu0 %v943, 112
        %v958 = vpop.permute.xlu0 %957
        %959 = vrot.lane.b32.xlu0 %v944, 112
        %v960 = vpop.permute.xlu0 %959
        %961 = vrot.lane.b32.xlu0 %v945, 112
        %v962 = vpop.permute.xlu0 %961
        %vm963 = vcmask 916480
        %v964 = vsel %vm963, %v958, %v960
        %v965 = vsel %vm963, %v960, %v962
        %v967 = vsel %vm570, %v953, 0
        %v970 = vsel %vm759, %v964, 0
        %v973 = vsel %vm759, %v965, 0
        %975 = vmatpush.bf16.msra.mxu0 0
        %976 = vmatpush.bf16.msra.mxu0 0
        %977 = vmatpush.bf16.msra.mxu0 0
        %978 = vmatpush.bf16.msra.mxu0 0
        %979 = vmatpush.bf16.msra.mxu0 0
        %980 = vmatpush.bf16.msra.mxu0 0
        %981 = vmatpush.bf16.msra.mxu0 0
        %982 = vmatpush.bf16.msra.mxu0 %v970
        %983 = vmatmul.bf16.gmra.mxu0 %v967
        %v984 = vpop.f32.mrf.mxu0
        %v985 = vadd.f32 0.0, %v984
        %v986 = vpop.f32.mrf.mxu0
        %v987 = vadd.f32 0.0, %v986
        %988 = vdwg.mxu0
        %989 = vmatpush.bf16.msra.mxu0 0
        %990 = vmatpush.bf16.msra.mxu0 0
        %991 = vmatpush.bf16.msra.mxu0 0
        %992 = vmatpush.bf16.msra.mxu0 0
        %993 = vmatpush.bf16.msra.mxu0 0
        %994 = vmatpush.bf16.msra.mxu0 0
        %995 = vmatpush.bf16.msra.mxu0 0
        %996 = vmatpush.bf16.msra.mxu0 %v973
        %997 = vmatmul.bf16.gmra.mxu0 %v967
        %v998 = vpop.f32.mrf.mxu0
        %v999 = vadd.f32 0.0, %v998
        %v1000 = vpop.f32.mrf.mxu0
        %v1001 = vadd.f32 0.0, %v1000
        %1002 = vdwg.mxu0
        %v1003 = vadd.f32 %v915, %v985
        %v1004 = vadd.f32 %v916, %v999
        %v1005 = vadd.f32 %v917, %v987
        %v1006 = vadd.f32 %v918, %v1001
        %s1007 = scalar_lea.vmem %s7, 32
        %v1008 = vld [vmem:[%s1007] sm:$0xf]
        %v1009 = vld [vmem:[%s1007 + $0x4] sm:$0xf]
        %v1012 = vunpack.c.l.b16 %v1008
        %v1013 = vunpack.c.l.b16 %v1009
        %v1014 = vpack.c.b16 %v1013, %v1012
        %v1016 = vsel %vm570, %v1014, 0
        %v1019 = vsel %vm759, %v697, 0
        %v1022 = vsel %vm759, %v698, 0
        %1024 = vmatpush.bf16.msra.mxu0 0
        %1025 = vmatpush.bf16.msra.mxu0 0
        %1026 = vmatpush.bf16.msra.mxu0 0
        %1027 = vmatpush.bf16.msra.mxu0 0
        %1028 = vmatpush.bf16.msra.mxu0 0
        %1029 = vmatpush.bf16.msra.mxu0 0
        %1030 = vmatpush.bf16.msra.mxu0 0
        %1031 = vmatpush.bf16.msra.mxu0 %v1019
        %1032 = vmatmul.bf16.gmra.mxu0 %v1016
        %v1033 = vpop.f32.mrf.mxu0
        %v1034 = vadd.f32 0.0, %v1033
        %v1035 = vpop.f32.mrf.mxu0
        %v1036 = vadd.f32 0.0, %v1035
        %1037 = vdwg.mxu0
        %1038 = vmatpush.bf16.msra.mxu0 0
        %1039 = vmatpush.bf16.msra.mxu0 0
        %1040 = vmatpush.bf16.msra.mxu0 0
        %1041 = vmatpush.bf16.msra.mxu0 0
        %1042 = vmatpush.bf16.msra.mxu0 0
        %1043 = vmatpush.bf16.msra.mxu0 0
        %1044 = vmatpush.bf16.msra.mxu0 0
        %1045 = vmatpush.bf16.msra.mxu0 %v1022
        %1046 = vmatmul.bf16.gmra.mxu0 %v1016
        %v1047 = vpop.f32.mrf.mxu0
        %v1048 = vadd.f32 0.0, %v1047
        %v1049 = vpop.f32.mrf.mxu0
        %v1050 = vadd.f32 0.0, %v1049
        %1051 = vdwg.mxu0
        %v1052 = vadd.f32 %v1003, %v1034
        %v1053 = vadd.f32 %v1004, %v1048
        %v1054 = vadd.f32 %v1005, %v1036
        %v1055 = vadd.f32 %v1006, %v1050
        %v1056 = vperm.slane %v920, 2
        %v1057 = vperm.slane %v924, 2
        %v1058 = vunpack.c.l.bf16 %v1056
        %v1059 = vunpack.c.l.bf16 %v1057
        %1062 = vrot.lane.b32.xlu0 %v1058, 18
        %v1063 = vpop.permute.xlu0 %1062
        %1064 = vrot.lane.b32.xlu0 %v1059, 18
        %v1065 = vpop.permute.xlu0 %1064
        %vm1066 = vcmask 146432
        %v1067 = vsel %vm1066, %v1063, %v1065
        %v1071 = vmul.f32 %v727, %v1063
        %v1072 = vmul.f32 %v728, %v1067
        %v1073 = vmul.f32 %v838, %v1065
        %v1074 = vpack.c.bf16 %v1071, %v1071
        %v1075 = vpack.c.bf16 %v1072, %v1072
        %v1076 = vpack.c.bf16 %v1073, %v1073
        %s1077 = scalar_lea.vmem %s7, 40
        %v1078 = vld [vmem:[%s1077] sm:$0xf]
        %v1079 = vld [vmem:[%s1077 + $0x4] sm:$0xf]
        %v1082 = vunpack.c.l.b16 %v1078
        %v1083 = vunpack.c.l.b16 %v1079
        %v1084 = vpack.c.b16 %v1083, %v1082
        %1088 = vrot.lane.b32.xlu0 %v1074, 110
        %v1089 = vpop.permute.xlu0 %1088
        %1090 = vrot.lane.b32.xlu0 %v1075, 110
        %v1091 = vpop.permute.xlu0 %1090
        %1092 = vrot.lane.b32.xlu0 %v1076, 110
        %v1093 = vpop.permute.xlu0 %1092
        %vm1094 = vcmask 900096
        %v1095 = vsel %vm1094, %v1089, %v1091
        %v1096 = vsel %vm1094, %v1091, %v1093
        %v1098 = vsel %vm570, %v1084, 0
        %v1101 = vsel %vm759, %v1095, 0
        %v1104 = vsel %vm759, %v1096, 0
        %1106 = vmatpush.bf16.msra.mxu0 0
        %1107 = vmatpush.bf16.msra.mxu0 0
        %1108 = vmatpush.bf16.msra.mxu0 0
        %1109 = vmatpush.bf16.msra.mxu0 0
        %1110 = vmatpush.bf16.msra.mxu0 0
        %1111 = vmatpush.bf16.msra.mxu0 0
        %1112 = vmatpush.bf16.msra.mxu0 0
        %1113 = vmatpush.bf16.msra.mxu0 %v1101
        %1114 = vmatmul.bf16.gmra.mxu0 %v1098
        %v1115 = vpop.f32.mrf.mxu0
        %v1116 = vadd.f32 0.0, %v1115
        %v1117 = vpop.f32.mrf.mxu0
        %v1118 = vadd.f32 0.0, %v1117
        %1119 = vdwg.mxu0
        %1120 = vmatpush.bf16.msra.mxu0 0
        %1121 = vmatpush.bf16.msra.mxu0 0
        %1122 = vmatpush.bf16.msra.mxu0 0
        %1123 = vmatpush.bf16.msra.mxu0 0
        %1124 = vmatpush.bf16.msra.mxu0 0
        %1125 = vmatpush.bf16.msra.mxu0 0
        %1126 = vmatpush.bf16.msra.mxu0 0
        %1127 = vmatpush.bf16.msra.mxu0 %v1104
        %1128 = vmatmul.bf16.gmra.mxu0 %v1098
        %v1129 = vpop.f32.mrf.mxu0
        %v1130 = vadd.f32 0.0, %v1129
        %v1131 = vpop.f32.mrf.mxu0
        %v1132 = vadd.f32 0.0, %v1131
        %1133 = vdwg.mxu0
        %v1134 = vadd.f32 %v1052, %v1116
        %v1135 = vadd.f32 %v1053, %v1130
        %v1136 = vadd.f32 %v1054, %v1118
        %v1137 = vadd.f32 %v1055, %v1132
        %v1138 = vperm.slane %v720, 3
        %v1139 = vperm.slane %v724, 3
        %v1140 = vunpack.c.l.bf16 %v1138
        %v1141 = vunpack.c.l.bf16 %v1139
        %1144 = vrot.lane.b32.xlu0 %v1140, 32
        %v1145 = vpop.permute.xlu0 %1144
        %1146 = vrot.lane.b32.xlu0 %v1141, 32
        %v1147 = vpop.permute.xlu0 %1146
        %vm1148 = vcmask 261120
        %v1149 = vsel %vm1148, %v1145, %v1147
        %v1153 = vmul.f32 %v727, %v1145
        %v1154 = vmul.f32 %v728, %v1149
        %v1155 = vmul.f32 %v838, %v1147
        %v1156 = vpack.c.bf16 %v1153, %v1153
        %v1157 = vpack.c.bf16 %v1154, %v1154
        %v1158 = vpack.c.bf16 %v1155, %v1155
        %s1159 = scalar_lea.vmem %s7, 48
        %v1160 = vld [vmem:[%s1159] sm:$0xf]
        %v1161 = vld [vmem:[%s1159 + $0x4] sm:$0xf]
        %v1164 = vunpack.c.l.b16 %v1160
        %v1165 = vunpack.c.l.b16 %v1161
        %v1166 = vpack.c.b16 %v1165, %v1164
        %1170 = vrot.lane.b32.xlu0 %v1156, 96
        %v1171 = vpop.permute.xlu0 %1170
        %1172 = vrot.lane.b32.xlu0 %v1157, 96
        %v1173 = vpop.permute.xlu0 %1172
        %1174 = vrot.lane.b32.xlu0 %v1158, 96
        %v1175 = vpop.permute.xlu0 %1174
        %vm1176 = vcmask 785408
        %v1177 = vsel %vm1176, %v1171, %v1173
        %v1178 = vsel %vm1176, %v1173, %v1175
        %v1180 = vsel %vm570, %v1166, 0
        %v1183 = vsel %vm759, %v1177, 0
        %v1186 = vsel %vm759, %v1178, 0
        %1188 = vmatpush.bf16.msra.mxu0 0
        %1189 = vmatpush.bf16.msra.mxu0 0
        %1190 = vmatpush.bf16.msra.mxu0 0
        %1191 = vmatpush.bf16.msra.mxu0 0
        %1192 = vmatpush.bf16.msra.mxu0 0
        %1193 = vmatpush.bf16.msra.mxu0 0
        %1194 = vmatpush.bf16.msra.mxu0 0
        %1195 = vmatpush.bf16.msra.mxu0 %v1183
        %1196 = vmatmul.bf16.gmra.mxu0 %v1180
        %v1197 = vpop.f32.mrf.mxu0
        %v1198 = vadd.f32 0.0, %v1197
        %v1199 = vpop.f32.mrf.mxu0
        %v1200 = vadd.f32 0.0, %v1199
        %1201 = vdwg.mxu0
        %1202 = vmatpush.bf16.msra.mxu0 0
        %1203 = vmatpush.bf16.msra.mxu0 0
        %1204 = vmatpush.bf16.msra.mxu0 0
        %1205 = vmatpush.bf16.msra.mxu0 0
        %1206 = vmatpush.bf16.msra.mxu0 0
        %1207 = vmatpush.bf16.msra.mxu0 0
        %1208 = vmatpush.bf16.msra.mxu0 0
        %1209 = vmatpush.bf16.msra.mxu0 %v1186
        %1210 = vmatmul.bf16.gmra.mxu0 %v1180
        %v1211 = vpop.f32.mrf.mxu0
        %v1212 = vadd.f32 0.0, %v1211
        %v1213 = vpop.f32.mrf.mxu0
        %v1214 = vadd.f32 0.0, %v1213
        %1215 = vdwg.mxu0
        %v1216 = vadd.f32 %v1134, %v1198
        %v1217 = vadd.f32 %v1135, %v1212
        %v1218 = vadd.f32 %v1136, %v1200
        %v1219 = vadd.f32 %v1137, %v1214
        %s1220 = scalar_lea.vmem %s7, 56
        %v1221 = vld [vmem:[%s1220] sm:$0xf]
        %v1222 = vld [vmem:[%s1220 + $0x4] sm:$0xf]
        %v1225 = vunpack.c.l.b16 %v1221
        %v1226 = vunpack.c.l.b16 %v1222
        %v1227 = vpack.c.b16 %v1226, %v1225
        %1228 = vrot.lane.b32.xlu0 %v709, 95
        %v1229 = vpop.permute.xlu0 %1228
        %1230 = vrot.lane.b32.xlu0 %v704, 95
        %v1231 = vpop.permute.xlu0 %1230
        %1232 = vrot.lane.b32.xlu0 %v712, 95
        %v1233 = vpop.permute.xlu0 %1232
        %vm1234 = vcmask 777216
        %v1235 = vsel %vm1234, %v1229, %v1231
        %v1236 = vsel %vm1234, %v1231, %v1233
        %v1238 = vsel %vm570, %v1227, 0
        %v1241 = vsel %vm759, %v1235, 0
        %v1244 = vsel %vm759, %v1236, 0
        %1246 = vmatpush.bf16.msra.mxu0 0
        %1247 = vmatpush.bf16.msra.mxu0 0
        %1248 = vmatpush.bf16.msra.mxu0 0
        %1249 = vmatpush.bf16.msra.mxu0 0
        %1250 = vmatpush.bf16.msra.mxu0 0
        %1251 = vmatpush.bf16.msra.mxu0 0
        %1252 = vmatpush.bf16.msra.mxu0 0
        %1253 = vmatpush.bf16.msra.mxu0 %v1241
        %1254 = vmatmul.bf16.gmra.mxu0 %v1238
        %v1255 = vpop.f32.mrf.mxu0
        %v1256 = vadd.f32 0.0, %v1255
        %v1257 = vpop.f32.mrf.mxu0
        %v1258 = vadd.f32 0.0, %v1257
        %1259 = vdwg.mxu0
        %1260 = vmatpush.bf16.msra.mxu0 0
        %1261 = vmatpush.bf16.msra.mxu0 0
        %1262 = vmatpush.bf16.msra.mxu0 0
        %1263 = vmatpush.bf16.msra.mxu0 0
        %1264 = vmatpush.bf16.msra.mxu0 0
        %1265 = vmatpush.bf16.msra.mxu0 0
        %1266 = vmatpush.bf16.msra.mxu0 0
        %1267 = vmatpush.bf16.msra.mxu0 %v1244
        %1268 = vmatmul.bf16.gmra.mxu0 %v1238
        %v1269 = vpop.f32.mrf.mxu0
        %v1270 = vadd.f32 0.0, %v1269
        %v1271 = vpop.f32.mrf.mxu0
        %v1272 = vadd.f32 0.0, %v1271
        %1273 = vdwg.mxu0
        %v1274 = vadd.f32 %v1216, %v1256
        %v1275 = vadd.f32 %v1217, %v1270
        %v1276 = vadd.f32 %v1218, %v1258
        %v1277 = vadd.f32 %v1219, %v1272
        %v1279 = vunpack.c.l.b16 %v563
        %v1280 = vunpack.c.h.b16 %v563
        %v1281 = vpack.c.b16 %v1279, %v1279
        %v1282 = vpack.c.b16 %v1280, %v1280
        %v1284 = vpack.i.b16 %v1281, %v1281
        %v1286 = vperm.slane %v1284, 0
        %v1288 = vpack.i.b16 %v1282, %v1282
        %v1290 = vperm.slane %v1288, 0
        %v1291 = vunpack.c.l.bf16 %v1286
        %v1292 = vunpack.c.l.bf16 %v1290
        %1295 = vrot.lane.b32.xlu0 %v1291, 34
        %v1296 = vpop.permute.xlu0 %1295
        %1297 = vrot.lane.b32.xlu0 %v1292, 34
        %v1298 = vpop.permute.xlu0 %1297
        %vm1299 = vcmask 277504
        %v1300 = vsel %vm1299, %v1296, %v1298
        %v1304 = vmul.f32 %v727, %v1296
        %v1305 = vmul.f32 %v728, %v1300
        %v1306 = vmul.f32 %v838, %v1298
        %v1307 = vpack.c.bf16 %v1304, %v1304
        %v1308 = vpack.c.bf16 %v1305, %v1305
        %v1309 = vpack.c.bf16 %v1306, %v1306
        %s1310 = scalar_lea.vmem %s7, 64
        %v1311 = vld [vmem:[%s1310] sm:$0xf]
        %v1312 = vld [vmem:[%s1310 + $0x4] sm:$0xf]
        %v1315 = vunpack.c.l.b16 %v1311
        %v1316 = vunpack.c.l.b16 %v1312
        %v1317 = vpack.c.b16 %v1316, %v1315
        %1321 = vrot.lane.b32.xlu0 %v1307, 94
        %v1322 = vpop.permute.xlu0 %1321
        %1323 = vrot.lane.b32.xlu0 %v1308, 94
        %v1324 = vpop.permute.xlu0 %1323
        %1325 = vrot.lane.b32.xlu0 %v1309, 94
        %v1326 = vpop.permute.xlu0 %1325
        %vm1327 = vcmask 769024
        %v1328 = vsel %vm1327, %v1322, %v1324
        %v1329 = vsel %vm1327, %v1324, %v1326
        %v1331 = vsel %vm570, %v1317, 0
        %v1334 = vsel %vm759, %v1328, 0
        %v1337 = vsel %vm759, %v1329, 0
        %1339 = vmatpush.bf16.msra.mxu0 0
        %1340 = vmatpush.bf16.msra.mxu0 0
        %1341 = vmatpush.bf16.msra.mxu0 0
        %1342 = vmatpush.bf16.msra.mxu0 0
        %1343 = vmatpush.bf16.msra.mxu0 0
        %1344 = vmatpush.bf16.msra.mxu0 0
        %1345 = vmatpush.bf16.msra.mxu0 0
        %1346 = vmatpush.bf16.msra.mxu0 %v1334
        %1347 = vmatmul.bf16.gmra.mxu0 %v1331
        %v1348 = vpop.f32.mrf.mxu0
        %v1349 = vadd.f32 0.0, %v1348
        %v1350 = vpop.f32.mrf.mxu0
        %v1351 = vadd.f32 0.0, %v1350
        %1352 = vdwg.mxu0
        %1353 = vmatpush.bf16.msra.mxu0 0
        %1354 = vmatpush.bf16.msra.mxu0 0
        %1355 = vmatpush.bf16.msra.mxu0 0
        %1356 = vmatpush.bf16.msra.mxu0 0
        %1357 = vmatpush.bf16.msra.mxu0 0
        %1358 = vmatpush.bf16.msra.mxu0 0
        %1359 = vmatpush.bf16.msra.mxu0 0
        %1360 = vmatpush.bf16.msra.mxu0 %v1337
        %1361 = vmatmul.bf16.gmra.mxu0 %v1331
        %v1362 = vpop.f32.mrf.mxu0
        %v1363 = vadd.f32 0.0, %v1362
        %v1364 = vpop.f32.mrf.mxu0
        %v1365 = vadd.f32 0.0, %v1364
        %1366 = vdwg.mxu0
        %v1367 = vadd.f32 %v1274, %v1349
        %v1368 = vadd.f32 %v1275, %v1363
        %v1369 = vadd.f32 %v1276, %v1351
        %v1370 = vadd.f32 %v1277, %v1365
        %v1371 = vld [vmem:[%s8] sm:$0xff]
        %v1372 = vld [vmem:[%s8 + $0x8] sm:$0xff]
        %1374 = vset.pattern.permute.xlu0 0
        %1375 = vperm.xlu0 %1374, %v1371
        %v1376 = vpop.permute.xlu0 %1375
        %1379 = vset.pattern.permute.xlu0 0
        %1380 = vperm.xlu0 %1379, %v1372
        %v1381 = vpop.permute.xlu0 %1380
        %v1383 = vadd.f32 %v1367, %v1376
        %v1384 = vadd.f32 %v1368, %v1376
        %v1385 = vadd.f32 %v1369, %v1381
        %v1386 = vadd.f32 %v1370, %v1381
        %v1387 = vadd.f32 %v1383, %v1384
        %1388 = vadd.xlane.f32.xlu0 %v1387
        %v1389 = vpop.xlane.xlu0 %1388
        %v1390 = vadd.f32 %v1385, %v1386
        %1391 = vadd.xlane.f32.xlu0 %v1390
        %v1392 = vpop.xlane.xlu0 %1391
        %v1393 = vld [vmem:[%s11] sm:$0xff]
        %v1394 = vld [vmem:[%s11 + $0x8] sm:$0xff]
        %v1396 = vsel %vm935, %v1393, 0
        %v1399 = vsel %vm935, %v1394, 0
        %1401 = vmatpush.msra.mxu0 0.0
        %1402 = vmatpush.msra.mxu0 0.0
        %1403 = vmatpush.msra.mxu0 0.0
        %1404 = vmatpush.msra.mxu0 0.0
        %1405 = vmatpush.msra.mxu0 0.0
        %1406 = vmatpush.msra.mxu0 0.0
        %1407 = vmatpush.msra.mxu0 0.0
        %1408 = vmatpush.msra.mxu0 0.0
        %1409 = vmatpush.msra.mxu0 0.0
        %1410 = vmatpush.msra.mxu0 0.0
        %1411 = vmatpush.msra.mxu0 0.0
        %1412 = vmatpush.msra.mxu0 0.0
        %1413 = vmatpush.msra.mxu0 0.0
        %1414 = vmatpush.msra.mxu0 0.0
        %1415 = vmatpush.msra.mxu0 %v1392
        %1416 = vmatpush.msra.mxu0 %v1389
        %1417 = vmatmul.f32.gmra.mxu0 %v1396
        %v1418 = vpop.f32.mrf.mxu0
        %v1419 = vadd.f32 0.0, %v1418
        %1420 = vmatmul.f32.gmra.mxu0 %v1399
        %v1421 = vpop.f32.mrf.mxu0
        %v1422 = vadd.f32 0.0, %v1421
        %1423 = vdwg.mxu0
        %1425 = vset.pattern.permute.xlu0 0
        %1426 = vperm.xlu0 %1425, %v1419
        %v1427 = vpop.permute.xlu0 %1426
        %1430 = vset.pattern.permute.xlu0 0
        %1431 = vperm.xlu0 %1430, %v1422
        %v1432 = vpop.permute.xlu0 %1431
        %v1434 = vsub.f32 %v1383, %v1427
        %v1435 = vsub.f32 %v1384, %v1427
        %v1436 = vsub.f32 %v1385, %v1432
        %v1437 = vsub.f32 %v1386, %v1432
        %v1438 = vmul.f32 %v1434, %v1434
        %v1439 = vmul.f32 %v1435, %v1435
        %v1440 = vmul.f32 %v1436, %v1436
        %v1441 = vmul.f32 %v1437, %v1437
        %v1442 = vadd.f32 %v1438, %v1439
        %1443 = vadd.xlane.f32.xlu0 %v1442
        %v1444 = vpop.xlane.xlu0 %1443
        %v1445 = vadd.f32 %v1440, %v1441
        %1446 = vadd.xlane.f32.xlu0 %v1445
        %v1447 = vpop.xlane.xlu0 %1446
        %1448 = vmatpush.msra.mxu0 0.0
        %1449 = vmatpush.msra.mxu0 0.0
        %1450 = vmatpush.msra.mxu0 0.0
        %1451 = vmatpush.msra.mxu0 0.0
        %1452 = vmatpush.msra.mxu0 0.0
        %1453 = vmatpush.msra.mxu0 0.0
        %1454 = vmatpush.msra.mxu0 0.0
        %1455 = vmatpush.msra.mxu0 0.0
        %1456 = vmatpush.msra.mxu0 0.0
        %1457 = vmatpush.msra.mxu0 0.0
        %1458 = vmatpush.msra.mxu0 0.0
        %1459 = vmatpush.msra.mxu0 0.0
        %1460 = vmatpush.msra.mxu0 0.0
        %1461 = vmatpush.msra.mxu0 0.0
        %1462 = vmatpush.msra.mxu0 %v1447
        %1463 = vmatpush.msra.mxu0 %v1444
        %1464 = vmatmul.f32.gmra.mxu0 %v1396
        %v1465 = vpop.f32.mrf.mxu0
        %v1466 = vadd.f32 1e-05, %v1465
        %1467 = vmatmul.f32.gmra.mxu0 %v1399
        %v1468 = vpop.f32.mrf.mxu0
        %v1469 = vadd.f32 1e-05, %v1468
        %1470 = vdwg.mxu0
        %v1471 = vrsqrt.pop %v1466
        %v1472 = vmul.f32 %v1471, %v1466
        %v1473 = vmul.f32 %v1472, %v1471
        %v1474 = vmul.f32 0.5, %v1473
        %v1475 = vsub.f32 1.5, %v1474
        %v1476 = vmul.f32 %v1471, %v1475
        %vm1477 = vweird.f32 %v1466
        %vm1478 = vweird.f32 %v1471
        %vm1479 = vmor %vm1477, %vm1478
        %v1480 = vsel %vm1479, %v1471, %v1476
        %v1481 = vrsqrt.pop %v1469
        %v1482 = vmul.f32 %v1481, %v1469
        %v1483 = vmul.f32 %v1482, %v1481
        %v1484 = vmul.f32 0.5, %v1483
        %v1485 = vsub.f32 1.5, %v1484
        %v1486 = vmul.f32 %v1481, %v1485
        %vm1487 = vweird.f32 %v1469
        %vm1488 = vweird.f32 %v1481
        %vm1489 = vmor %vm1487, %vm1488
        %v1490 = vsel %vm1489, %v1481, %v1486
        %v1491 = vld [vmem:[%s9] sm:$0xff]
        %v1492 = vld [vmem:[%s9 + $0x8] sm:$0xff]
        %v1493 = vmul.f32 %v1480, %v1491
        %v1494 = vmul.f32 %v1490, %v1492
        %1496 = vset.pattern.permute.xlu0 0
        %1497 = vperm.xlu0 %1496, %v1493
        %v1498 = vpop.permute.xlu0 %1497
        %1501 = vset.pattern.permute.xlu0 0
        %1502 = vperm.xlu0 %1501, %v1494
        %v1503 = vpop.permute.xlu0 %1502
        %v1505 = vmul.f32 %v1434, %v1498
        %v1506 = vmul.f32 %v1435, %v1498
        %v1507 = vmul.f32 %v1436, %v1503
        %v1508 = vmul.f32 %v1437, %v1503
        %v1509 = vld [vmem:[%s10] sm:$0xff]
        %v1510 = vld [vmem:[%s10 + $0x8] sm:$0xff]
        %1512 = vset.pattern.permute.xlu0 0
        %1513 = vperm.xlu0 %1512, %v1509
        %v1514 = vpop.permute.xlu0 %1513
        %1517 = vset.pattern.permute.xlu0 0
        %1518 = vperm.xlu0 %1517, %v1510
        %v1519 = vpop.permute.xlu0 %1518
        %v1521 = vadd.f32 %v1505, %v1514
        %v1522 = vadd.f32 %v1506, %v1514
        %v1523 = vadd.f32 %v1507, %v1519
        %v1524 = vadd.f32 %v1508, %v1519
        %v1525 = vld [vmem:[%s554] sm:$0xff]
        %v1526 = vld [vmem:[%s554 + $0x8] sm:$0xff]
        %v1527 = vadd.f32 %v1525, 1.0
        %v1528 = vadd.f32 %v1526, 1.0
        %1530 = vset.pattern.permute.xlu0 0
        %1531 = vperm.xlu0 %1530, %v1527
        %v1532 = vpop.permute.xlu0 %1531
        %1535 = vset.pattern.permute.xlu0 0
        %1536 = vperm.xlu0 %1535, %v1528
        %v1537 = vpop.permute.xlu0 %1536
        %v1539 = vmul.f32 %v1521, %v1532
        %v1540 = vmul.f32 %v1522, %v1532
        %v1541 = vmul.f32 %v1523, %v1537
        %v1542 = vmul.f32 %v1524, %v1537
        %v1543 = vld [vmem:[%s559] sm:$0xff]
        %v1544 = vld [vmem:[%s559 + $0x8] sm:$0xff]
        %1546 = vset.pattern.permute.xlu0 0
        %1547 = vperm.xlu0 %1546, %v1543
        %v1548 = vpop.permute.xlu0 %1547
        %1551 = vset.pattern.permute.xlu0 0
        %1552 = vperm.xlu0 %1551, %v1544
        %v1553 = vpop.permute.xlu0 %1552
        %v1555 = vadd.f32 %v1539, %v1548
        %v1556 = vadd.f32 %v1540, %v1548
        %v1557 = vadd.f32 %v1541, %v1553
        %v1558 = vadd.f32 %v1542, %v1553
        %v1559 = vxor.u32 %v1555, 2147483648
        %v1560 = vxor.u32 %v1556, 2147483648
        %v1561 = vxor.u32 %v1557, 2147483648
        %v1562 = vxor.u32 %v1558, 2147483648
        %v1563 = vmul.f32 %v1559, 1.442695
        %v1564 = vpow.pop %v1563
        %v1565 = vmul.f32 %v1560, 1.442695
        %v1566 = vpow.pop %v1565
        %v1567 = vmul.f32 %v1561, 1.442695
        %v1568 = vpow.pop %v1567
        %v1569 = vmul.f32 %v1562, 1.442695
        %v1570 = vpow.pop %v1569
        %v1571 = vadd.f32 %v1564, 1.0
        %v1572 = vadd.f32 %v1566, 1.0
        %v1573 = vadd.f32 %v1568, 1.0
        %v1574 = vadd.f32 %v1570, 1.0
        %v1575 = vrcp.pop %v1571
        %v1576 = vmul.f32 %v1571, %v1575
        %v1577 = vsub.f32 1.0, %v1576
        %v1578 = vmul.f32 %v1575, %v1577
        %v1579 = vadd.f32 %v1575, %v1578
        %vm1580 = vweird.f32 %v1571
        %vm1581 = vweird.f32 %v1575
        %vm1582 = vmor %vm1580, %vm1581
        %v1583 = vsel %vm1582, %v1575, %v1579
        %v1584 = vand.u32 2147483647, %v1571
        %vm1585 = vcmp.eq.f32.partialorder %v1584, 8.507059e+37
        %v1586 = vand.u32 %v1571, 2147483648
        %v1587 = vor.u32 1.1754944e-38, %v1586
        %v1588 = vsel %vm1585, %v1587, %v1583
        %v1589 = vmul.f32 1.0, %v1588
        %v1590 = vrcp.pop %v1572
        %v1591 = vmul.f32 %v1572, %v1590
        %v1592 = vsub.f32 1.0, %v1591
        %v1593 = vmul.f32 %v1590, %v1592
        %v1594 = vadd.f32 %v1590, %v1593
        %vm1595 = vweird.f32 %v1572
        %vm1596 = vweird.f32 %v1590
        %vm1597 = vmor %vm1595, %vm1596
        %v1598 = vsel %vm1597, %v1590, %v1594
        %v1599 = vand.u32 2147483647, %v1572
        %vm1600 = vcmp.eq.f32.partialorder %v1599, 8.507059e+37
        %v1601 = vand.u32 %v1572, 2147483648
        %v1602 = vor.u32 1.1754944e-38, %v1601
        %v1603 = vsel %vm1600, %v1602, %v1598
        %v1604 = vmul.f32 1.0, %v1603
        %v1605 = vrcp.pop %v1573
        %v1606 = vmul.f32 %v1573, %v1605
        %v1607 = vsub.f32 1.0, %v1606
        %v1608 = vmul.f32 %v1605, %v1607
        %v1609 = vadd.f32 %v1605, %v1608
        %vm1610 = vweird.f32 %v1573
        %vm1611 = vweird.f32 %v1605
        %vm1612 = vmor %vm1610, %vm1611
        %v1613 = vsel %vm1612, %v1605, %v1609
        %v1614 = vand.u32 2147483647, %v1573
        %vm1615 = vcmp.eq.f32.partialorder %v1614, 8.507059e+37
        %v1616 = vand.u32 %v1573, 2147483648
        %v1617 = vor.u32 1.1754944e-38, %v1616
        %v1618 = vsel %vm1615, %v1617, %v1613
        %v1619 = vmul.f32 1.0, %v1618
        %v1620 = vrcp.pop %v1574
        %v1621 = vmul.f32 %v1574, %v1620
        %v1622 = vsub.f32 1.0, %v1621
        %v1623 = vmul.f32 %v1620, %v1622
        %v1624 = vadd.f32 %v1620, %v1623
        %vm1625 = vweird.f32 %v1574
        %vm1626 = vweird.f32 %v1620
        %vm1627 = vmor %vm1625, %vm1626
        %v1628 = vsel %vm1627, %v1620, %v1624
        %v1629 = vand.u32 2147483647, %v1574
        %vm1630 = vcmp.eq.f32.partialorder %v1629, 8.507059e+37
        %v1631 = vand.u32 %v1574, 2147483648
        %v1632 = vor.u32 1.1754944e-38, %v1631
        %v1633 = vsel %vm1630, %v1632, %v1628
        %v1634 = vmul.f32 1.0, %v1633
        %v1635 = vmul.f32 %v1555, %v1589
        %v1636 = vmul.f32 %v1556, %v1604
        %v1637 = vmul.f32 %v1557, %v1619
        %v1638 = vmul.f32 %v1558, %v1634
        %v1639 = vpack.c.bf16 %v1636, %v1635
        %v1640 = vpack.c.bf16 %v1638, %v1637
        %v1643 = vunpack.c.l.b16 %v1639
        %v1644 = vunpack.c.h.b16 %v1639
        %v1645 = vunpack.c.l.b16 %v1640
        %v1646 = vunpack.c.h.b16 %v1640
        %v1647 = vpack.c.b16 %v1645, %v1643
        %v1648 = vpack.c.b16 %v1646, %v1644
        %1649 = vrot.lane.b32.xlu0 %v1647, 17
        %v1650 = vpop.permute.xlu0 %1649
        %1651 = vrot.lane.b32.xlu0 %v1648, 17
        %v1652 = vpop.permute.xlu0 %1651
        %v1653 = vsel %vm703, %v1650, %v1652
        %v1656 = vsel %vm706, 0, %v1650
        %v1659 = vsel %vm706, %v1652, 0
        %v1661 = vunpack.c.l.bf16 %v1656
        %v1662 = vunpack.c.l.bf16 %v1653
        %v1663 = vunpack.c.h.bf16 %v1656
        %v1664 = vunpack.c.h.bf16 %v1653
        %v1665 = vmul.f32 %v1661, %v729
        %v1666 = vmul.f32 %v1662, %v730
        %v1667 = vmul.f32 %v1663, %v729
        %v1668 = vmul.f32 %v1664, %v730
        %v1669 = vpack.c.bf16 %v1667, %v1665
        %v1670 = vpack.c.bf16 %v1668, %v1666
        %v1671 = vld [vmem:[%s12] sm:$0xf]
        %v1672 = vld [vmem:[%s12 + $0x4] sm:$0xf]
        %s1673 = scalar_lea.vmem %s12, 8
        %v1674 = vld [vmem:[%s1673] sm:$0xf]
        %v1675 = vld [vmem:[%s1673 + $0x4] sm:$0xf]
        %v1678 = vunpack.c.l.b16 %v1674
        %v1679 = vunpack.c.l.b16 %v1675
        %v1680 = vpack.c.b16 %v1679, %v1678
        %1683 = vrot.lane.b32.xlu0 %v1656, 127
        %v1684 = vpop.permute.xlu0 %1683
        %1685 = vrot.lane.b32.xlu0 %v1653, 127
        %v1686 = vpop.permute.xlu0 %1685
        %1687 = vrot.lane.b32.xlu0 %v1659, 127
        %v1688 = vpop.permute.xlu0 %1687
        %v1689 = vsel %vm753, %v1684, %v1686
        %v1690 = vsel %vm753, %v1686, %v1688
        %v1694 = vsel %vm935, %v1680, 0
        %1696 = vmatpush.bf16.msra.mxu0 0
        %1697 = vmatpush.bf16.msra.mxu0 0
        %1698 = vmatpush.bf16.msra.mxu0 0
        %1699 = vmatpush.bf16.msra.mxu0 0
        %1700 = vmatpush.bf16.msra.mxu0 0
        %1701 = vmatpush.bf16.msra.mxu0 0
        %1702 = vmatpush.bf16.msra.mxu0 0
        %1703 = vmatpush.bf16.msra.mxu0 %v1689
        %1704 = vmatmul.bf16.gmra.mxu0 %v1694
        %v1705 = vpop.f32.mrf.mxu0
        %v1706 = vadd.f32 0.0, %v1705
        %v1707 = vpop.f32.mrf.mxu0
        %v1708 = vadd.f32 0.0, %v1707
        %1709 = vdwg.mxu0
        %1710 = vmatpush.bf16.msra.mxu0 0
        %1711 = vmatpush.bf16.msra.mxu0 0
        %1712 = vmatpush.bf16.msra.mxu0 0
        %1713 = vmatpush.bf16.msra.mxu0 0
        %1714 = vmatpush.bf16.msra.mxu0 0
        %1715 = vmatpush.bf16.msra.mxu0 0
        %1716 = vmatpush.bf16.msra.mxu0 0
        %1717 = vmatpush.bf16.msra.mxu0 %v1690
        %1718 = vmatmul.bf16.gmra.mxu0 %v1694
        %v1719 = vpop.f32.mrf.mxu0
        %v1720 = vadd.f32 0.0, %v1719
        %v1721 = vpop.f32.mrf.mxu0
        %v1722 = vadd.f32 0.0, %v1721
        %1723 = vdwg.mxu0
        %v1726 = vunpack.c.l.b16 %v1671
        %v1727 = vunpack.c.l.b16 %v1672
        %v1728 = vpack.c.b16 %v1727, %v1726
        %v1730 = vsel %vm935, %v1728, 0
        %1732 = vmatpush.bf16.msra.mxu0 0
        %1733 = vmatpush.bf16.msra.mxu0 0
        %1734 = vmatpush.bf16.msra.mxu0 0
        %1735 = vmatpush.bf16.msra.mxu0 0
        %1736 = vmatpush.bf16.msra.mxu0 0
        %1737 = vmatpush.bf16.msra.mxu0 0
        %1738 = vmatpush.bf16.msra.mxu0 0
        %1739 = vmatpush.bf16.msra.mxu0 %v1669
        %1740 = vmatmul.bf16.gmra.mxu0 %v1730
        %v1741 = vpop.f32.mrf.mxu0
        %v1742 = vadd.f32 %v1706, %v1741
        %v1743 = vpop.f32.mrf.mxu0
        %v1744 = vadd.f32 %v1708, %v1743
        %1745 = vdwg.mxu0
        %1746 = vmatpush.bf16.msra.mxu0 0
        %1747 = vmatpush.bf16.msra.mxu0 0
        %1748 = vmatpush.bf16.msra.mxu0 0
        %1749 = vmatpush.bf16.msra.mxu0 0
        %1750 = vmatpush.bf16.msra.mxu0 0
        %1751 = vmatpush.bf16.msra.mxu0 0
        %1752 = vmatpush.bf16.msra.mxu0 0
        %1753 = vmatpush.bf16.msra.mxu0 %v1670
        %1754 = vmatmul.bf16.gmra.mxu0 %v1730
        %v1755 = vpop.f32.mrf.mxu0
        %v1756 = vadd.f32 %v1720, %v1755
        %v1757 = vpop.f32.mrf.mxu0
        %v1758 = vadd.f32 %v1722, %v1757
        %1759 = vdwg.mxu0
        %v1760 = vunpack.c.l.bf16 %v1659
        %v1761 = vunpack.c.h.bf16 %v1659
        %v1762 = vmul.f32 %v1661, %v844
        %v1763 = vmul.f32 %v1662, %v848
        %v1764 = vmul.f32 %v1760, %v846
        %v1765 = vmul.f32 %v1663, %v844
        %v1766 = vmul.f32 %v1664, %v848
        %v1767 = vmul.f32 %v1761, %v846
        %v1768 = vpack.c.bf16 %v1765, %v1762
        %v1769 = vpack.c.bf16 %v1766, %v1763
        %v1770 = vpack.c.bf16 %v1767, %v1764
        %s1771 = scalar_lea.vmem %s12, 16
        %v1772 = vld [vmem:[%s1771] sm:$0xf]
        %v1773 = vld [vmem:[%s1771 + $0x4] sm:$0xf]
        %v1776 = vunpack.c.l.b16 %v1772
        %v1777 = vunpack.c.l.b16 %v1773
        %v1778 = vpack.c.b16 %v1777, %v1776
        %1782 = vrot.lane.b32.xlu0 %v1768, 126
        %v1783 = vpop.permute.xlu0 %1782
        %1784 = vrot.lane.b32.xlu0 %v1769, 126
        %v1785 = vpop.permute.xlu0 %1784
        %1786 = vrot.lane.b32.xlu0 %v1770, 126
        %v1787 = vpop.permute.xlu0 %1786
        %v1788 = vsel %vm875, %v1783, %v1785
        %v1789 = vsel %vm875, %v1785, %v1787
        %v1793 = vsel %vm935, %v1778, 0
        %1795 = vmatpush.bf16.msra.mxu0 0
        %1796 = vmatpush.bf16.msra.mxu0 0
        %1797 = vmatpush.bf16.msra.mxu0 0
        %1798 = vmatpush.bf16.msra.mxu0 0
        %1799 = vmatpush.bf16.msra.mxu0 0
        %1800 = vmatpush.bf16.msra.mxu0 0
        %1801 = vmatpush.bf16.msra.mxu0 0
        %1802 = vmatpush.bf16.msra.mxu0 %v1788
        %1803 = vmatmul.bf16.gmra.mxu0 %v1793
        %v1804 = vpop.f32.mrf.mxu0
        %v1805 = vadd.f32 0.0, %v1804
        %v1806 = vpop.f32.mrf.mxu0
        %v1807 = vadd.f32 0.0, %v1806
        %1808 = vdwg.mxu0
        %1809 = vmatpush.bf16.msra.mxu0 0
        %1810 = vmatpush.bf16.msra.mxu0 0
        %1811 = vmatpush.bf16.msra.mxu0 0
        %1812 = vmatpush.bf16.msra.mxu0 0
        %1813 = vmatpush.bf16.msra.mxu0 0
        %1814 = vmatpush.bf16.msra.mxu0 0
        %1815 = vmatpush.bf16.msra.mxu0 0
        %1816 = vmatpush.bf16.msra.mxu0 %v1789
        %1817 = vmatmul.bf16.gmra.mxu0 %v1793
        %v1818 = vpop.f32.mrf.mxu0
        %v1819 = vadd.f32 0.0, %v1818
        %v1820 = vpop.f32.mrf.mxu0
        %v1821 = vadd.f32 0.0, %v1820
        %1822 = vdwg.mxu0
        %v1823 = vadd.f32 %v1742, %v1805
        %v1824 = vadd.f32 %v1756, %v1819
        %v1825 = vadd.f32 %v1744, %v1807
        %v1826 = vadd.f32 %v1758, %v1821
        %v1827 = vmul.f32 %v1661, %v932
        %v1828 = vmul.f32 %v1662, %v936
        %v1829 = vmul.f32 %v1760, %v934
        %v1830 = vmul.f32 %v1663, %v932
        %v1831 = vmul.f32 %v1664, %v936
        %v1832 = vmul.f32 %v1761, %v934
        %v1833 = vpack.c.bf16 %v1830, %v1827
        %v1834 = vpack.c.bf16 %v1831, %v1828
        %v1835 = vpack.c.bf16 %v1832, %v1829
        %s1836 = scalar_lea.vmem %s12, 24
        %v1837 = vld [vmem:[%s1836] sm:$0xf]
        %v1838 = vld [vmem:[%s1836 + $0x4] sm:$0xf]
        %v1841 = vunpack.c.l.b16 %v1837
        %v1842 = vunpack.c.l.b16 %v1838
        %v1843 = vpack.c.b16 %v1842, %v1841
        %1847 = vrot.lane.b32.xlu0 %v1833, 112
        %v1848 = vpop.permute.xlu0 %1847
        %1849 = vrot.lane.b32.xlu0 %v1834, 112
        %v1850 = vpop.permute.xlu0 %1849
        %1851 = vrot.lane.b32.xlu0 %v1835, 112
        %v1852 = vpop.permute.xlu0 %1851
        %v1853 = vsel %vm963, %v1848, %v1850
        %v1854 = vsel %vm963, %v1850, %v1852
        %v1858 = vsel %vm935, %v1843, 0
        %1860 = vmatpush.bf16.msra.mxu0 0
        %1861 = vmatpush.bf16.msra.mxu0 0
        %1862 = vmatpush.bf16.msra.mxu0 0
        %1863 = vmatpush.bf16.msra.mxu0 0
        %1864 = vmatpush.bf16.msra.mxu0 0
        %1865 = vmatpush.bf16.msra.mxu0 0
        %1866 = vmatpush.bf16.msra.mxu0 0
        %1867 = vmatpush.bf16.msra.mxu0 %v1853
        %1868 = vmatmul.bf16.gmra.mxu0 %v1858
        %v1869 = vpop.f32.mrf.mxu0
        %v1870 = vadd.f32 0.0, %v1869
        %v1871 = vpop.f32.mrf.mxu0
        %v1872 = vadd.f32 0.0, %v1871
        %1873 = vdwg.mxu0
        %1874 = vmatpush.bf16.msra.mxu0 0
        %1875 = vmatpush.bf16.msra.mxu0 0
        %1876 = vmatpush.bf16.msra.mxu0 0
        %1877 = vmatpush.bf16.msra.mxu0 0
        %1878 = vmatpush.bf16.msra.mxu0 0
        %1879 = vmatpush.bf16.msra.mxu0 0
        %1880 = vmatpush.bf16.msra.mxu0 0
        %1881 = vmatpush.bf16.msra.mxu0 %v1854
        %1882 = vmatmul.bf16.gmra.mxu0 %v1858
        %v1883 = vpop.f32.mrf.mxu0
        %v1884 = vadd.f32 0.0, %v1883
        %v1885 = vpop.f32.mrf.mxu0
        %v1886 = vadd.f32 0.0, %v1885
        %1887 = vdwg.mxu0
        %v1888 = vadd.f32 %v1823, %v1870
        %v1889 = vadd.f32 %v1824, %v1884
        %v1890 = vadd.f32 %v1825, %v1872
        %v1891 = vadd.f32 %v1826, %v1886
        %s1892 = scalar_lea.vmem %s12, 32
        %v1893 = vld [vmem:[%s1892] sm:$0xf]
        %v1894 = vld [vmem:[%s1892 + $0x4] sm:$0xf]
        %v1897 = vunpack.c.l.b16 %v1893
        %v1898 = vunpack.c.l.b16 %v1894
        %v1899 = vpack.c.b16 %v1898, %v1897
        %v1903 = vsel %vm935, %v1899, 0
        %1905 = vmatpush.bf16.msra.mxu0 0
        %1906 = vmatpush.bf16.msra.mxu0 0
        %1907 = vmatpush.bf16.msra.mxu0 0
        %1908 = vmatpush.bf16.msra.mxu0 0
        %1909 = vmatpush.bf16.msra.mxu0 0
        %1910 = vmatpush.bf16.msra.mxu0 0
        %1911 = vmatpush.bf16.msra.mxu0 0
        %1912 = vmatpush.bf16.msra.mxu0 %v1647
        %1913 = vmatmul.bf16.gmra.mxu0 %v1903
        %v1914 = vpop.f32.mrf.mxu0
        %v1915 = vadd.f32 0.0, %v1914
        %v1916 = vpop.f32.mrf.mxu0
        %v1917 = vadd.f32 0.0, %v1916
        %1918 = vdwg.mxu0
        %1919 = vmatpush.bf16.msra.mxu0 0
        %1920 = vmatpush.bf16.msra.mxu0 0
        %1921 = vmatpush.bf16.msra.mxu0 0
        %1922 = vmatpush.bf16.msra.mxu0 0
        %1923 = vmatpush.bf16.msra.mxu0 0
        %1924 = vmatpush.bf16.msra.mxu0 0
        %1925 = vmatpush.bf16.msra.mxu0 0
        %1926 = vmatpush.bf16.msra.mxu0 %v1648
        %1927 = vmatmul.bf16.gmra.mxu0 %v1903
        %v1928 = vpop.f32.mrf.mxu0
        %v1929 = vadd.f32 0.0, %v1928
        %v1930 = vpop.f32.mrf.mxu0
        %v1931 = vadd.f32 0.0, %v1930
        %1932 = vdwg.mxu0
        %v1933 = vadd.f32 %v1888, %v1915
        %v1934 = vadd.f32 %v1889, %v1929
        %v1935 = vadd.f32 %v1890, %v1917
        %v1936 = vadd.f32 %v1891, %v1931
        %v1937 = vmul.f32 %v1661, %v1063
        %v1938 = vmul.f32 %v1662, %v1067
        %v1939 = vmul.f32 %v1760, %v1065
        %v1940 = vmul.f32 %v1663, %v1063
        %v1941 = vmul.f32 %v1664, %v1067
        %v1942 = vmul.f32 %v1761, %v1065
        %v1943 = vpack.c.bf16 %v1940, %v1937
        %v1944 = vpack.c.bf16 %v1941, %v1938
        %v1945 = vpack.c.bf16 %v1942, %v1939
        %s1946 = scalar_lea.vmem %s12, 40
        %v1947 = vld [vmem:[%s1946] sm:$0xf]
        %v1948 = vld [vmem:[%s1946 + $0x4] sm:$0xf]
        %v1951 = vunpack.c.l.b16 %v1947
        %v1952 = vunpack.c.l.b16 %v1948
        %v1953 = vpack.c.b16 %v1952, %v1951
        %1957 = vrot.lane.b32.xlu0 %v1943, 110
        %v1958 = vpop.permute.xlu0 %1957
        %1959 = vrot.lane.b32.xlu0 %v1944, 110
        %v1960 = vpop.permute.xlu0 %1959
        %1961 = vrot.lane.b32.xlu0 %v1945, 110
        %v1962 = vpop.permute.xlu0 %1961
        %v1963 = vsel %vm1094, %v1958, %v1960
        %v1964 = vsel %vm1094, %v1960, %v1962
        %v1968 = vsel %vm935, %v1953, 0
        %1970 = vmatpush.bf16.msra.mxu0 0
        %1971 = vmatpush.bf16.msra.mxu0 0
        %1972 = vmatpush.bf16.msra.mxu0 0
        %1973 = vmatpush.bf16.msra.mxu0 0
        %1974 = vmatpush.bf16.msra.mxu0 0
        %1975 = vmatpush.bf16.msra.mxu0 0
        %1976 = vmatpush.bf16.msra.mxu0 0
        %1977 = vmatpush.bf16.msra.mxu0 %v1963
        %1978 = vmatmul.bf16.gmra.mxu0 %v1968
        %v1979 = vpop.f32.mrf.mxu0
        %v1980 = vadd.f32 0.0, %v1979
        %v1981 = vpop.f32.mrf.mxu0
        %v1982 = vadd.f32 0.0, %v1981
        %1983 = vdwg.mxu0
        %1984 = vmatpush.bf16.msra.mxu0 0
        %1985 = vmatpush.bf16.msra.mxu0 0
        %1986 = vmatpush.bf16.msra.mxu0 0
        %1987 = vmatpush.bf16.msra.mxu0 0
        %1988 = vmatpush.bf16.msra.mxu0 0
        %1989 = vmatpush.bf16.msra.mxu0 0
        %1990 = vmatpush.bf16.msra.mxu0 0
        %1991 = vmatpush.bf16.msra.mxu0 %v1964
        %1992 = vmatmul.bf16.gmra.mxu0 %v1968
        %v1993 = vpop.f32.mrf.mxu0
        %v1994 = vadd.f32 0.0, %v1993
        %v1995 = vpop.f32.mrf.mxu0
        %v1996 = vadd.f32 0.0, %v1995
        %1997 = vdwg.mxu0
        %v1998 = vadd.f32 %v1933, %v1980
        %v1999 = vadd.f32 %v1934, %v1994
        %v2000 = vadd.f32 %v1935, %v1982
        %v2001 = vadd.f32 %v1936, %v1996
        %v2002 = vmul.f32 %v1661, %v1145
        %v2003 = vmul.f32 %v1662, %v1149
        %v2004 = vmul.f32 %v1760, %v1147
        %v2005 = vmul.f32 %v1663, %v1145
        %v2006 = vmul.f32 %v1664, %v1149
        %v2007 = vmul.f32 %v1761, %v1147
        %v2008 = vpack.c.bf16 %v2005, %v2002
        %v2009 = vpack.c.bf16 %v2006, %v2003
        %v2010 = vpack.c.bf16 %v2007, %v2004
        %s2011 = scalar_lea.vmem %s12, 48
        %v2012 = vld [vmem:[%s2011] sm:$0xf]
        %v2013 = vld [vmem:[%s2011 + $0x4] sm:$0xf]
        %v2016 = vunpack.c.l.b16 %v2012
        %v2017 = vunpack.c.l.b16 %v2013
        %v2018 = vpack.c.b16 %v2017, %v2016
        %2022 = vrot.lane.b32.xlu0 %v2008, 96
        %v2023 = vpop.permute.xlu0 %2022
        %2024 = vrot.lane.b32.xlu0 %v2009, 96
        %v2025 = vpop.permute.xlu0 %2024
        %2026 = vrot.lane.b32.xlu0 %v2010, 96
        %v2027 = vpop.permute.xlu0 %2026
        %v2028 = vsel %vm1176, %v2023, %v2025
        %v2029 = vsel %vm1176, %v2025, %v2027
        %v2033 = vsel %vm935, %v2018, 0
        %2035 = vmatpush.bf16.msra.mxu0 0
        %2036 = vmatpush.bf16.msra.mxu0 0
        %2037 = vmatpush.bf16.msra.mxu0 0
        %2038 = vmatpush.bf16.msra.mxu0 0
        %2039 = vmatpush.bf16.msra.mxu0 0
        %2040 = vmatpush.bf16.msra.mxu0 0
        %2041 = vmatpush.bf16.msra.mxu0 0
        %2042 = vmatpush.bf16.msra.mxu0 %v2028
        %2043 = vmatmul.bf16.gmra.mxu0 %v2033
        %v2044 = vpop.f32.mrf.mxu0
        %v2045 = vadd.f32 0.0, %v2044
        %v2046 = vpop.f32.mrf.mxu0
        %v2047 = vadd.f32 0.0, %v2046
        %2048 = vdwg.mxu0
        %2049 = vmatpush.bf16.msra.mxu0 0
        %2050 = vmatpush.bf16.msra.mxu0 0
        %2051 = vmatpush.bf16.msra.mxu0 0
        %2052 = vmatpush.bf16.msra.mxu0 0
        %2053 = vmatpush.bf16.msra.mxu0 0
        %2054 = vmatpush.bf16.msra.mxu0 0
        %2055 = vmatpush.bf16.msra.mxu0 0
        %2056 = vmatpush.bf16.msra.mxu0 %v2029
        %2057 = vmatmul.bf16.gmra.mxu0 %v2033
        %v2058 = vpop.f32.mrf.mxu0
        %v2059 = vadd.f32 0.0, %v2058
        %v2060 = vpop.f32.mrf.mxu0
        %v2061 = vadd.f32 0.0, %v2060
        %2062 = vdwg.mxu0
        %v2063 = vadd.f32 %v1998, %v2045
        %v2064 = vadd.f32 %v1999, %v2059
        %v2065 = vadd.f32 %v2000, %v2047
        %v2066 = vadd.f32 %v2001, %v2061
        %s2067 = scalar_lea.vmem %s12, 56
        %v2068 = vld [vmem:[%s2067] sm:$0xf]
        %v2069 = vld [vmem:[%s2067 + $0x4] sm:$0xf]
        %v2072 = vunpack.c.l.b16 %v2068
        %v2073 = vunpack.c.l.b16 %v2069
        %v2074 = vpack.c.b16 %v2073, %v2072
        %2075 = vrot.lane.b32.xlu0 %v1656, 95
        %v2076 = vpop.permute.xlu0 %2075
        %2077 = vrot.lane.b32.xlu0 %v1653, 95
        %v2078 = vpop.permute.xlu0 %2077
        %2079 = vrot.lane.b32.xlu0 %v1659, 95
        %v2080 = vpop.permute.xlu0 %2079
        %v2081 = vsel %vm1234, %v2076, %v2078
        %v2082 = vsel %vm1234, %v2078, %v2080
        %v2086 = vsel %vm935, %v2074, 0
        %2088 = vmatpush.bf16.msra.mxu0 0
        %2089 = vmatpush.bf16.msra.mxu0 0
        %2090 = vmatpush.bf16.msra.mxu0 0
        %2091 = vmatpush.bf16.msra.mxu0 0
        %2092 = vmatpush.bf16.msra.mxu0 0
        %2093 = vmatpush.bf16.msra.mxu0 0
        %2094 = vmatpush.bf16.msra.mxu0 0
        %2095 = vmatpush.bf16.msra.mxu0 %v2081
        %2096 = vmatmul.bf16.gmra.mxu0 %v2086
        %v2097 = vpop.f32.mrf.mxu0
        %v2098 = vadd.f32 0.0, %v2097
        %v2099 = vpop.f32.mrf.mxu0
        %v2100 = vadd.f32 0.0, %v2099
        %2101 = vdwg.mxu0
        %2102 = vmatpush.bf16.msra.mxu0 0
        %2103 = vmatpush.bf16.msra.mxu0 0
        %2104 = vmatpush.bf16.msra.mxu0 0
        %2105 = vmatpush.bf16.msra.mxu0 0
        %2106 = vmatpush.bf16.msra.mxu0 0
        %2107 = vmatpush.bf16.msra.mxu0 0
        %2108 = vmatpush.bf16.msra.mxu0 0
        %2109 = vmatpush.bf16.msra.mxu0 %v2082
        %2110 = vmatmul.bf16.gmra.mxu0 %v2086
        %v2111 = vpop.f32.mrf.mxu0
        %v2112 = vadd.f32 0.0, %v2111
        %v2113 = vpop.f32.mrf.mxu0
        %v2114 = vadd.f32 0.0, %v2113
        %2115 = vdwg.mxu0
        %v2116 = vadd.f32 %v2063, %v2098
        %v2117 = vadd.f32 %v2064, %v2112
        %v2118 = vadd.f32 %v2065, %v2100
        %v2119 = vadd.f32 %v2066, %v2114
        %v2120 = vmul.f32 %v1661, %v1296
        %v2121 = vmul.f32 %v1662, %v1300
        %v2122 = vmul.f32 %v1760, %v1298
        %v2123 = vmul.f32 %v1663, %v1296
        %v2124 = vmul.f32 %v1664, %v1300
        %v2125 = vmul.f32 %v1761, %v1298
        %v2126 = vpack.c.bf16 %v2123, %v2120
        %v2127 = vpack.c.bf16 %v2124, %v2121
        %v2128 = vpack.c.bf16 %v2125, %v2122
        %s2129 = scalar_lea.vmem %s12, 64
        %v2130 = vld [vmem:[%s2129] sm:$0xf]
        %v2131 = vld [vmem:[%s2129 + $0x4] sm:$0xf]
        %v2134 = vunpack.c.l.b16 %v2130
        %v2135 = vunpack.c.l.b16 %v2131
        %v2136 = vpack.c.b16 %v2135, %v2134
        %2140 = vrot.lane.b32.xlu0 %v2126, 94
        %v2141 = vpop.permute.xlu0 %2140
        %2142 = vrot.lane.b32.xlu0 %v2127, 94
        %v2143 = vpop.permute.xlu0 %2142
        %2144 = vrot.lane.b32.xlu0 %v2128, 94
        %v2145 = vpop.permute.xlu0 %2144
        %v2146 = vsel %vm1327, %v2141, %v2143
        %v2147 = vsel %vm1327, %v2143, %v2145
        %v2151 = vsel %vm935, %v2136, 0
        %2153 = vmatpush.bf16.msra.mxu0 0
        %2154 = vmatpush.bf16.msra.mxu0 0
        %2155 = vmatpush.bf16.msra.mxu0 0
        %2156 = vmatpush.bf16.msra.mxu0 0
        %2157 = vmatpush.bf16.msra.mxu0 0
        %2158 = vmatpush.bf16.msra.mxu0 0
        %2159 = vmatpush.bf16.msra.mxu0 0
        %2160 = vmatpush.bf16.msra.mxu0 %v2146
        %2161 = vmatmul.bf16.gmra.mxu0 %v2151
        %v2162 = vpop.f32.mrf.mxu0
        %v2163 = vadd.f32 0.0, %v2162
        %v2164 = vpop.f32.mrf.mxu0
        %v2165 = vadd.f32 0.0, %v2164
        %2166 = vdwg.mxu0
        %2167 = vmatpush.bf16.msra.mxu0 0
        %2168 = vmatpush.bf16.msra.mxu0 0
        %2169 = vmatpush.bf16.msra.mxu0 0
        %2170 = vmatpush.bf16.msra.mxu0 0
        %2171 = vmatpush.bf16.msra.mxu0 0
        %2172 = vmatpush.bf16.msra.mxu0 0
        %2173 = vmatpush.bf16.msra.mxu0 0
        %2174 = vmatpush.bf16.msra.mxu0 %v2147
        %2175 = vmatmul.bf16.gmra.mxu0 %v2151
        %v2176 = vpop.f32.mrf.mxu0
        %v2177 = vadd.f32 0.0, %v2176
        %v2178 = vpop.f32.mrf.mxu0
        %v2179 = vadd.f32 0.0, %v2178
        %2180 = vdwg.mxu0
        %v2181 = vadd.f32 %v2116, %v2163
        %v2182 = vadd.f32 %v2117, %v2177
        %v2183 = vadd.f32 %v2118, %v2165
        %v2184 = vadd.f32 %v2119, %v2179
        %v2185 = vld [vmem:[%s13] sm:$0xff]
        %v2186 = vld [vmem:[%s13 + $0x8] sm:$0xff]
        %2188 = vset.pattern.permute.xlu0 0
        %2189 = vperm.xlu0 %2188, %v2185
        %v2190 = vpop.permute.xlu0 %2189
        %2193 = vset.pattern.permute.xlu0 0
        %2194 = vperm.xlu0 %2193, %v2186
        %v2195 = vpop.permute.xlu0 %2194
        %v2197 = vadd.f32 %v2181, %v2190
        %v2198 = vadd.f32 %v2182, %v2190
        %v2199 = vadd.f32 %v2183, %v2195
        %v2200 = vadd.f32 %v2184, %v2195
        %v2201 = vld [vmem:[%s14] sm:$0xf]
        %v2202 = vld [vmem:[%s14 + $0x4] sm:$0xf]
        %v2203 = vld [vmem:[%s15] sm:$0xff]
        %v2204 = vld [vmem:[%s15 + $0x8] sm:$0xff]
        %2206 = vset.pattern.permute.xlu0 0
        %2207 = vperm.xlu0 %2206, %v2203
        %v2208 = vpop.permute.xlu0 %2207
        %2211 = vset.pattern.permute.xlu0 0
        %2212 = vperm.xlu0 %2211, %v2204
        %v2213 = vpop.permute.xlu0 %2212
        %v2217 = vunpack.c.l.b16 %v2201
        %v2218 = vunpack.c.l.b16 %v2202
        %v2219 = vpack.c.b16 %v2218, %v2217
        %v2221 = vunpack.c.l.b16 %v561
        %v2222 = vunpack.c.h.b16 %v561
        %v2223 = vpack.c.b16 %v2221, %v2221
        %v2224 = vpack.c.b16 %v2222, %v2222
        %v2226 = vsel %vm570, %v2219, 0
        %v2229 = vsel %vm759, %v2223, 0
        %v2232 = vsel %vm759, %v2224, 0
        %2234 = vmatpush.bf16.msra.mxu0 0
        %2235 = vmatpush.bf16.msra.mxu0 0
        %2236 = vmatpush.bf16.msra.mxu0 0
        %2237 = vmatpush.bf16.msra.mxu0 0
        %2238 = vmatpush.bf16.msra.mxu0 0
        %2239 = vmatpush.bf16.msra.mxu0 0
        %2240 = vmatpush.bf16.msra.mxu0 0
        %2241 = vmatpush.bf16.msra.mxu0 %v2229
        %2242 = vmatmul.bf16.gmra.mxu0 %v2226
        %v2243 = vpop.f32.mrf.mxu0
        %v2244 = vadd.f32 %v2208, %v2243
        %v2245 = vpop.f32.mrf.mxu0
        %v2246 = vadd.f32 %v2213, %v2245
        %2247 = vdwg.mxu0
        %2248 = vmatpush.bf16.msra.mxu0 0
        %2249 = vmatpush.bf16.msra.mxu0 0
        %2250 = vmatpush.bf16.msra.mxu0 0
        %2251 = vmatpush.bf16.msra.mxu0 0
        %2252 = vmatpush.bf16.msra.mxu0 0
        %2253 = vmatpush.bf16.msra.mxu0 0
        %2254 = vmatpush.bf16.msra.mxu0 0
        %2255 = vmatpush.bf16.msra.mxu0 %v2232
        %2256 = vmatmul.bf16.gmra.mxu0 %v2226
        %v2257 = vpop.f32.mrf.mxu0
        %v2258 = vadd.f32 %v2208, %v2257
        %v2259 = vpop.f32.mrf.mxu0
        %v2260 = vadd.f32 %v2213, %v2259
        %2261 = vdwg.mxu0
        %v2262 = vadd.f32 %v2197, %v2244
        %v2263 = vadd.f32 %v2198, %v2258
        %v2264 = vadd.f32 %v2199, %v2246
        %v2265 = vadd.f32 %v2200, %v2260
        %2266 = vst [vmem:[%s544] sm:$0xff] %v2262
        %2267 = vst [vmem:[%s544 + $0x8] sm:$0xff] %v2263
        %2268 = vst [vmem:[%s544 + $0x10] sm:$0xff] %v2264
        %2269 = vst [vmem:[%s544 + $0x18] sm:$0xff] %v2265
        %s2270 = sand.u32 %s389, 1
        %s2271 = scalar_lea.sflag [#allocation3], %s2270
        %s2272 = sand.u32 %s389, 1
        %s2273 = smul.addr %s2272, 32
        %s2274 = scalar_lea.vmem [#allocation2], %s2273
        // Predicated region
        $region85: #{tpu_custom_call.1} parent=83 // pred_check
          %p2275 = pneg %p399
        $region86: #{tpu_custom_call.1} parent=83 // pred_check_branch
          %2277 = sbr.rel (%p2275) target = $region88
        $region87: #{tpu_custom_call.1} parent=83 // pred_region
          %2279 = vsyncadd %s2271, 0
          %s2280 = smul.addr %s30, 4
          %s2281 = smul.addr %s2280, 8
          %s2282 = scalar_lea.hbm %s16, %s2281
          %s2283 = sshll.u32 %s2274, 4
          %s2284 = int_to_ptr.vmem [resolvable:$true] %s2283
          %s2285 = sshll.u32 %s2282, 4
          %s2286 = int_to_ptr.hbm [resolvable:$true] %s2285
          %2291 = dma.vmem_to_hbm [thread:$0]  %s2284, 512, %s2286, %s2271, 256, 256, 16
        $region88: #{tpu_custom_call.1} parent=83 // pred_fallthru
          _
      $region84: #{tpu_custom_call.1} parent=5 // pred_fallthru
        _
      %p2292 = scmp.le.s32.totalorder 2, %s25
      // Predicated region
      $region89: #{tpu_custom_call.1} parent=5 // pred_check
        %p2293 = pneg %p2292
      $region90: #{tpu_custom_call.1} parent=5 // pred_check_branch
        %2295 = sbr.rel (%p2293) target = $region92
      $region91: #{tpu_custom_call.1} parent=5 // pred_region
        %s2296 = ssub.s32 %s25, 2
        // Predicated region
        $region93: #{tpu_custom_call.1} parent=91 // pred_check
          %p2297 = pneg %p405
        $region94: #{tpu_custom_call.1} parent=91 // pred_check_branch
          %2299 = sbr.rel (%p2297) target = $region96
        $region95: #{tpu_custom_call.1} parent=91 // pred_region
          %s2300 = sand.u32 %s390, 1
          %s2301 = scalar_lea.sflag [#allocation3], %s2300
          %s2302 = sand.u32 %s390, 1
          %s2303 = smul.addr %s2302, 32
          %s2304 = scalar_lea.vmem [#allocation2], %s2303
          %2306 = dma.done %s2301, 512
        $region96: #{tpu_custom_call.1} parent=91 // pred_fallthru
          _
      $region92: #{tpu_custom_call.1} parent=5 // pred_fallthru
        _
    $region6: #{tpu_custom_call.1} parent=1 // loop_footer
      %s29 = sadd.s32 1, %s25
    $region7: #{tpu_custom_call.1} parent=1 // loop_footer_branch
      %24 = sbr.rel target = $region3
    $region8: #{tpu_custom_call.1} parent=1 // loop_exit
      _
    %2307 = vsyncpa [#allocation3], 1
    %s2308 = scalar_lea.sflag [#allocation3], 1
    %2309 = vsyncpa %s2308, 1

</llo_original>
